<compile_context>
chip_gen: v5e
topology: v5e:2x2
jax: 0.10.0
libtpu: 0.0.40
codegen_flags: <defaults>
</compile_context>

<pallas_src>
import math
from functools import partial

import jax
import jax.numpy as jnp
from jax import lax
from jax.experimental import pallas as pl
from jax.experimental.pallas import tpu as pltpu

D_MODEL = 32     # d_model
HEADS = 4        # heads
D_HEAD = D_MODEL // HEADS
D_FF = 64        # d_ff
EPS = 1e-6
NEG_INF = -1e18  # matches masked_fill(mask, -1e18)


# ----------------------------------------------------------------------------
# math helpers (f32)
# ----------------------------------------------------------------------------
def _layer_norm(x, g, b):
    mu = jnp.mean(x, axis=-1, keepdims=True)
    var = jnp.mean((x - mu) ** 2, axis=-1, keepdims=True)
    return (x - mu) * lax.rsqrt(var + EPS) * g + b


def _mha_core(q, k, v, bias, bb, tq, tk, heads, export_attn=False):
    """Head-batched multi-head attention core.

    q: (bb*tq, heads*dh) f32, already scaled by 1/sqrt(dh)
    k, v: (bb*tk, heads*dh) f32
    bias: additive mask (0 / NEG_INF), broadcastable to (bb, tq, tk)
    Returns (ctx (heads, bb, tq, dh) f32, head-0 attention (bb*tq, tk) or None).
    """
    d = q.shape[-1]
    dh = d // heads
    bf16 = jnp.bfloat16

    def split_heads(x2d, tlen):
        x3 = x2d.reshape(bb, tlen, d)
        # leading-axis stack of per-head lane slices -> (heads*bb, tlen, dh)
        return jnp.concatenate(
            [x3[:, :, h * dh:(h + 1) * dh] for h in range(heads)], axis=0)

    qh = split_heads(q, tq).astype(bf16)
    kh = split_heads(k, tk).astype(bf16)
    vh = split_heads(v, tk).astype(bf16)

    # One score matmul, one bias add and one softmax for ALL heads.
    s = jnp.einsum("bqd,bkd->bqk", qh, kh, preferred_element_type=jnp.float32)
    s = s.reshape(heads, bb, tq, tk) + bias          # bias broadcast across heads
    m = jnp.max(s, axis=-1, keepdims=True)
    e = jnp.exp(s - m)
    denom = jnp.sum(e, axis=-1, keepdims=True)
    p = e * pl.reciprocal(denom, approx=True)        # hot path: approx (EUP slot)

    attn0 = None
    if export_attn:
        # user-visible attention (head 0): exact normalization, rows sum to 1
        attn0 = (e[0] / denom[0]).reshape(bb * tq, tk)

    ctx = jnp.einsum("bqk,bkd->bqd",
                     p.reshape(heads * bb, tq, tk).astype(bf16), vh,
                     preferred_element_type=jnp.float32)
    return ctx.reshape(heads, bb, tq, dh), attn0


def _attn_output(ctx4, wo, bo):
    """sum_h ctx_h @ Wo_h  (per-head accumulated output projection; no lane
    concatenation of 8-wide context pieces).

    ctx4: (heads, bb, tq, dh) f32; wo: (heads, dh, D) bf16; bo: (1, D) f32.
    """
    heads, bb, tq, dh = ctx4.shape
    out = None
    for h in range(heads):
        c = ctx4[h].reshape(bb * tq, dh).astype(jnp.bfloat16)
        term = jnp.dot(c, wo[h], preferred_element_type=jnp.float32)
        out = term if out is None else out + term
    return out + bo


# ----------------------------------------------------------------------------
# Pallas kernel: one batch block per grid step
# ----------------------------------------------------------------------------
def decoder_layer_kernel(x_ref, mem_ref, tgt_mask_ref, src_mask_ref, ln_ref,
                         sa_wqkv_ref, sa_bqkv_ref, sa_wo_ref, sa_bo_ref,
                         cx_wq_ref, cx_bq_ref, cx_wkv_ref, cx_bkv_ref,
                         cx_wo_ref, cx_bo_ref,
                         w1_ref, b1_ref, w2_ref, b2_ref,
                         out_ref, *, heads):
    bb, _, t = tgt_mask_ref.shape            # batch-block size, tgt length
    s_len = src_mask_ref.shape[2]            # src length
    d = x_ref.shape[-1]
    dh = d // heads
    n_rows = bb * t
    scale = 1.0 / math.sqrt(dh)
    bf16 = jnp.bfloat16

    x = x_ref[...]                           # (bb*t, d) flattened batch block, f32
    mem = mem_ref[...]                       # (bb*s, d) f32
    ln = ln_ref[...]                         # (6, d) f32

    # ---- masks: additive 0 / NEG_INF, computed once per attention ----------
    row = lax.broadcasted_iota(jnp.int32, (t, t), 0)
    col = lax.broadcasted_iota(jnp.int32, (t, t), 1)
    dec_masked = jnp.logical_or((col > row)[None, :, :],
                                tgt_mask_ref[...] > 0.0)         # (bb, t, t)
    dec_bias = jnp.where(dec_masked, NEG_INF, 0.0)               # (bb, t, t)
    src_bias = jnp.where(src_mask_ref[...] > 0.0, NEG_INF, 0.0)  # (bb, 1, s)

    # ---- layer_norm_1 + masked multi-head self-attention --------------------
    x_norm = _layer_norm(x, ln[0], ln[1])
    qkv = (jnp.dot(x_norm.astype(bf16), sa_wqkv_ref[...],
                   preferred_element_type=jnp.float32) + sa_bqkv_ref[...])
    sa_ctx, _ = _mha_core(qkv[:, :d] * scale, qkv[:, d:2 * d], qkv[:, 2 * d:],
                          dec_bias, bb, t, t, heads)
    sa_out = _attn_output(sa_ctx, sa_wo_ref[...], sa_bo_ref[...])

    # ---- residual (dropout == identity) + layer_norm_2 (== ori_query) -------
    query = sa_out + x
    query_norm = _layer_norm(query, ln[2], ln[3])

    # ---- context attention over the memory bank ------------------------------
    qc = (jnp.dot(query_norm.astype(bf16), cx_wq_ref[...],
                  preferred_element_type=jnp.float32) + cx_bq_ref[...]) * scale
    kvc = (jnp.dot(mem.astype(bf16), cx_wkv_ref[...],
                   preferred_element_type=jnp.float32) + cx_bkv_ref[...])
    cx_ctx, attn0 = _mha_core(qc, kvc[:, :d], kvc[:, d:], src_bias,
                              bb, t, s_len, heads, export_attn=True)
    mid = _attn_output(cx_ctx, cx_wo_ref[...], cx_bo_ref[...])

    # ---- PositionwiseFeedForward: pre-LN -> w1 -> relu -> w2 -> residual -----
    ff_in = mid + query
    ff_norm = _layer_norm(ff_in, ln[4], ln[5])
    inter = jnp.maximum(
        jnp.dot(ff_norm.astype(bf16), w1_ref[...],
                preferred_element_type=jnp.float32) + b1_ref[...], 0.0)
    out_val = (jnp.dot(inter.astype(bf16), w2_ref[...],
                       preferred_element_type=jnp.float32)
               + b2_ref[...] + ff_in)

    # ---- single lane-dense packed store: [out | ori_query | attn | pad] -----
    pack_w = out_ref.shape[-1]
    pad = pack_w - (2 * d + s_len)
    pieces = [out_val, query_norm, attn0]
    if pad > 0:
        pieces.append(jnp.zeros((n_rows, pad), jnp.float32))
    out_ref[...] = jnp.concatenate(pieces, axis=-1)


# ----------------------------------------------------------------------------
# Wrapper: weight prep (bf16 / per-head Wo), block_b choice, pallas_call
# ----------------------------------------------------------------------------
_WEIGHT_NAMES = ["ln", "sa_wqkv", "sa_bqkv", "sa_wo", "sa_bo",
                 "cx_wq", "cx_bq", "cx_wkv", "cx_bkv", "cx_wo", "cx_bo",
                 "w1", "b1", "w2", "b2"]
_BF16_WEIGHTS = {"sa_wqkv", "sa_wo", "cx_wq", "cx_wkv", "cx_wo", "w1", "w2"}


def _prep_weights(params, heads):
    """bf16 matmul weights; Wo reshaped to (heads, dh, D) for leading-dim
    per-head indexing inside the kernel (no lane concat / unaligned slices)."""
    d = params["sa_wo"].shape[0]
    dh = d // heads
    prepped = {}
    for n in _WEIGHT_NAMES:
        w = params[n]
        if n in ("sa_wo", "cx_wo"):
            w = w.reshape(heads, dh, d)
        if n in _BF16_WEIGHTS:
            w = w.astype(jnp.bfloat16)
        prepped[n] = w
    return prepped


def _pick_block_b(B, T, S):
    """Largest proper divisor of B giving >= 2 grid steps (software pipelining
    on all chips + both TensorCores on v7x) with block rows <= ~1024 and
    multiples of 8 (sublane tiling); falls back to the whole batch."""
    for cand in range(B - 1, 0, -1):
        if B % cand:
            continue
        if (cand * T) % 8 or (cand * S) % 8:
            continue
        if cand * T <= 1024:
            return cand
    return B


def transformer_decoder_layer(inputs, memory_bank, src_pad_mask, tgt_pad_mask,
                              params, block_b=None):
    B, T, D = inputs.shape
    S = memory_bank.shape[1]
    if block_b is None:
        block_b = _pick_block_b(B, T, S)
    assert B % block_b == 0, "block_b must divide the batch size"
    if block_b != B:
        assert (block_b * T) % 8 == 0 and (block_b * S) % 8 == 0, (
            "block_b*T and block_b*S must be multiples of 8 (sublane tiling)")
    nb = B // block_b

    # Packed lane-dense output width (>=128 lanes, unmasked vst).
    pack_w = max(128, pl.cdiv(2 * D + S, 128) * 128)
    assert 2 * D + S <= pack_w

    # Flattened, batch-major activation slabs (f32 in HBM; bf16 only at dots).
    x_flat = inputs.reshape(B * T, D)
    mem_flat = memory_bank.reshape(B * S, D)
    tgt_mask = tgt_pad_mask.astype(jnp.float32)     # (B, 1, T), 1 => masked
    src_mask = src_pad_mask.astype(jnp.float32)     # (B, 1, S), 1 => masked
    weights = _prep_weights(params, HEADS)

    def rep(shape):  # replicated (constant-index) weight block: VMEM-resident
        return pl.BlockSpec(shape, lambda b, _n=len(shape): (0,) * _n)

    grid_spec = pltpu.PrefetchScalarGridSpec(
        num_scalar_prefetch=0,
        grid=(nb,),
        in_specs=[
            pl.BlockSpec((block_b * T, D), lambda b: (b, 0)),     # inputs (flat)
            pl.BlockSpec((block_b * S, D), lambda b: (b, 0)),     # memory (flat)
            pl.BlockSpec((block_b, 1, T), lambda b: (b, 0, 0)),   # tgt pad mask
            pl.BlockSpec((block_b, 1, S), lambda b: (b, 0, 0)),   # src pad mask
        ] + [rep(weights[n].shape) for n in _WEIGHT_NAMES],
        out_specs=pl.BlockSpec((block_b * T, pack_w), lambda b: (b, 0)),
    )
    fn = pl.pallas_call(
        partial(decoder_layer_kernel, heads=HEADS),
        out_shape=jax.ShapeDtypeStruct((B * T, pack_w), jnp.float32),
        grid_spec=grid_spec,
        compiler_params=pltpu.CompilerParams(
            dimension_semantics=("parallel",)),
    )
    packed = fn(x_flat, mem_flat, tgt_mask, src_mask,
                *[weights[n] for n in _WEIGHT_NAMES])
    output = packed[:, :D].reshape(B, T, D)
    ori_query = packed[:, D:2 * D].reshape(B, T, D)
    attn = packed[:, 2 * D:2 * D + S].reshape(B, T, S)
    return output, {"std": attn}, ori_query


# ----------------------------------------------------------------------------
# Deterministic parameter init (fused QKV / KV layouts)
# ----------------------------------------------------------------------------
def init_params(key):
    ks = jax.random.split(key, 14)

    def w(k, fi, fo):
        return jax.random.normal(k, (fi, fo), jnp.float32) * 0.05

    def b(k, n):
        return jax.random.normal(k, (1, n), jnp.float32) * 0.02

    ln = jnp.stack([jnp.ones(D_MODEL, jnp.float32),
                    jnp.zeros(D_MODEL, jnp.float32)] * 3)   # (6, D)
    return {
        "ln": ln,
        "sa_wqkv": w(ks[0], D_MODEL, 3 * D_MODEL), "sa_bqkv": b(ks[1], 3 * D_MODEL),
        "sa_wo": w(ks[2], D_MODEL, D_MODEL), "sa_bo": b(ks[3], D_MODEL),
        "cx_wq": w(ks[4], D_MODEL, D_MODEL), "cx_bq": b(ks[5], D_MODEL),
        "cx_wkv": w(ks[6], D_MODEL, 2 * D_MODEL), "cx_bkv": b(ks[7], 2 * D_MODEL),
        "cx_wo": w(ks[8], D_MODEL, D_MODEL), "cx_bo": b(ks[9], D_MODEL),
        "w1": w(ks[10], D_MODEL, D_FF), "b1": b(ks[11], D_FF),
        "w2": w(ks[12], D_FF, D_MODEL), "b2": b(ks[13], D_MODEL),
    }


# ----------------------------------------------------------------------------
# Pure-JAX f32 reference (exact softmax, masked_fill semantics)
# ----------------------------------------------------------------------------
def _ref_mha(q_in, kv_in, mask, wq, bq, wk, bk, wv, bv, wo, bo, heads):
    B, Tq, D = q_in.shape
    Tk = kv_in.shape[1]
    dh = D // heads
    q = (q_in @ wq + bq).reshape(B, Tq, heads, dh)
    k = (kv_in @ wk + bk).reshape(B, Tk, heads, dh)
    v = (kv_in @ wv + bv).reshape(B, Tk, heads, dh)
    scores = jnp.einsum("bqhd,bkhd->bhqk", q / math.sqrt(dh), k)
    scores = jnp.where(mask[:, None], NEG_INF, scores)
    p = jax.nn.softmax(scores, axis=-1)
    ctx = jnp.einsum("bhqk,bkhd->bqhd", p, v).reshape(B, Tq, D)
    return ctx @ wo + bo, p[:, 0]


def reference(inputs, memory_bank, src_pad_mask, tgt_pad_mask, params):
    B, T, D = inputs.shape
    future = jnp.triu(jnp.ones((T, T), dtype=bool), k=1)
    dec_mask = jnp.logical_or(tgt_pad_mask.astype(bool), future[None])  # (B,T,T)
    src_mask = src_pad_mask.astype(bool)                                # (B,1,S)
    p = params
    ln = p["ln"]

    x_norm = _layer_norm(inputs, ln[0], ln[1])
    sa, _ = _ref_mha(x_norm, x_norm, dec_mask,
                     p["sa_wqkv"][:, :D], p["sa_bqkv"][:, :D],
                     p["sa_wqkv"][:, D:2 * D], p["sa_bqkv"][:, D:2 * D],
                     p["sa_wqkv"][:, 2 * D:], p["sa_bqkv"][:, 2 * D:],
                     p["sa_wo"], p["sa_bo"], HEADS)
    query = sa + inputs
    query_norm = _layer_norm(query, ln[2], ln[3])
    mid, attn = _ref_mha(query_norm, memory_bank, src_mask,
                         p["cx_wq"], p["cx_bq"],
                         p["cx_wkv"][:, :D], p["cx_bkv"][:, :D],
                         p["cx_wkv"][:, D:], p["cx_bkv"][:, D:],
                         p["cx_wo"], p["cx_bo"], HEADS)
    ff_in = mid + query
    ff_norm = _layer_norm(ff_in, ln[4], ln[5])
    inter = jnp.maximum(ff_norm @ p["w1"] + p["b1"], 0.0)
    out = inter @ p["w2"] + p["b2"] + ff_in
    return out, attn, query_norm


# TODO(synk): know_query_type='iter_query' branch (KnowledgeAttention) is
# inactive with the default constructor args and is not implemented.

if __name__ == "__main__":
    import numpy as np

    key = jax.random.PRNGKey(0)
    k_in, k_mem, k_par = jax.random.split(key, 3)

    B, T, S = 2, 8, 8
    inputs = jax.random.normal(k_in, (B, T, D_MODEL), jnp.float32)
    memory_bank = jax.random.normal(k_mem, (B, S, D_MODEL), jnp.float32)
    # pad masks (1 = padded); mask the last two source positions of batch 1
    src_pad_mask = jnp.zeros((B, 1, S), jnp.int32).at[1, 0, S - 2:].set(1)
    tgt_pad_mask = jnp.zeros((B, 1, T), jnp.int32)

    params = init_params(k_par)

    output, attns, ori_query = transformer_decoder_layer(
        inputs, memory_bank, src_pad_mask, tgt_pad_mask, params)
    jax.block_until_ready((output, attns["std"], ori_query))

    ref_out, ref_attn, ref_ori = reference(
        inputs, memory_bank, src_pad_mask, tgt_pad_mask, params)
    # tolerance accounts for bf16 matmul inputs (f32 accumulate) and the
    # approximate reciprocal in the kernel softmax hot path
    assert np.allclose(np.asarray(output), np.asarray(ref_out),
                       atol=2e-2, rtol=2e-2)
    assert np.allclose(np.asarray(attns["std"]), np.asarray(ref_attn),
                       atol=1e-2, rtol=1e-2)
    assert np.allclose(np.asarray(ori_query), np.asarray(ref_ori),
                       atol=2e-2, rtol=2e-2)

    print("KERNEL_OK")
</pallas_src>

<mosaic_0001>
module attributes {stable_mosaic.version = 11 : i64} {
  func.func @decoder_layer_kernel(%arg0: i32, %arg1: memref<8x32xf32, #tpu.memory_space<vmem>>, %arg2: memref<8x32xf32, #tpu.memory_space<vmem>>, %arg3: memref<1x1x8xf32, #tpu.memory_space<vmem>>, %arg4: memref<1x1x8xf32, #tpu.memory_space<vmem>>, %arg5: memref<6x32xf32, #tpu.memory_space<vmem>>, %arg6: memref<32x96xbf16, #tpu.memory_space<vmem>>, %arg7: memref<1x96xf32, #tpu.memory_space<vmem>>, %arg8: memref<4x8x32xbf16, #tpu.memory_space<vmem>>, %arg9: memref<1x32xf32, #tpu.memory_space<vmem>>, %arg10: memref<32x32xbf16, #tpu.memory_space<vmem>>, %arg11: memref<1x32xf32, #tpu.memory_space<vmem>>, %arg12: memref<32x64xbf16, #tpu.memory_space<vmem>>, %arg13: memref<1x64xf32, #tpu.memory_space<vmem>>, %arg14: memref<4x8x32xbf16, #tpu.memory_space<vmem>>, %arg15: memref<1x32xf32, #tpu.memory_space<vmem>>, %arg16: memref<32x64xbf16, #tpu.memory_space<vmem>>, %arg17: memref<1x64xf32, #tpu.memory_space<vmem>>, %arg18: memref<64x32xbf16, #tpu.memory_space<vmem>>, %arg19: memref<1x32xf32, #tpu.memory_space<vmem>>, %arg20: memref<8x128xf32, #tpu.memory_space<vmem>>) attributes {dimension_semantics = [#tpu.dimension_semantics<parallel>], iteration_bounds = array<i64: 2>, scalar_prefetch = 0 : i64, scratch_operands = 0 : i64, tpu.core_type = #tpu.core_type<tc>, window_params = [{transform_indices = @transform_0, window_bounds = array<i64: 8, 32>}, {transform_indices = @transform_1, window_bounds = array<i64: 8, 32>}, {transform_indices = @transform_2, window_bounds = array<i64: 1, 1, 8>}, {transform_indices = @transform_3, window_bounds = array<i64: 1, 1, 8>}, {pipeline_mode = #tpu.pipeline_mode<synchronous>, transform_indices = @transform_4, window_bounds = array<i64: 6, 32>}, {pipeline_mode = #tpu.pipeline_mode<synchronous>, transform_indices = @transform_5, window_bounds = array<i64: 32, 96>}, {pipeline_mode = #tpu.pipeline_mode<synchronous>, transform_indices = @transform_6, window_bounds = array<i64: 1, 96>}, {pipeline_mode = #tpu.pipeline_mode<synchronous>, transform_indices = @transform_7, window_bounds = array<i64: 4, 8, 32>}, {pipeline_mode = #tpu.pipeline_mode<synchronous>, transform_indices = @transform_8, window_bounds = array<i64: 1, 32>}, {pipeline_mode = #tpu.pipeline_mode<synchronous>, transform_indices = @transform_9, window_bounds = array<i64: 32, 32>}, {pipeline_mode = #tpu.pipeline_mode<synchronous>, transform_indices = @transform_10, window_bounds = array<i64: 1, 32>}, {pipeline_mode = #tpu.pipeline_mode<synchronous>, transform_indices = @transform_11, window_bounds = array<i64: 32, 64>}, {pipeline_mode = #tpu.pipeline_mode<synchronous>, transform_indices = @transform_12, window_bounds = array<i64: 1, 64>}, {pipeline_mode = #tpu.pipeline_mode<synchronous>, transform_indices = @transform_13, window_bounds = array<i64: 4, 8, 32>}, {pipeline_mode = #tpu.pipeline_mode<synchronous>, transform_indices = @transform_14, window_bounds = array<i64: 1, 32>}, {pipeline_mode = #tpu.pipeline_mode<synchronous>, transform_indices = @transform_15, window_bounds = array<i64: 32, 64>}, {pipeline_mode = #tpu.pipeline_mode<synchronous>, transform_indices = @transform_16, window_bounds = array<i64: 1, 64>}, {pipeline_mode = #tpu.pipeline_mode<synchronous>, transform_indices = @transform_17, window_bounds = array<i64: 64, 32>}, {pipeline_mode = #tpu.pipeline_mode<synchronous>, transform_indices = @transform_18, window_bounds = array<i64: 1, 32>}, {transform_indices = @transform_19, window_bounds = array<i64: 8, 128>}]} {
    %c0 = arith.constant 0 : index
    %c0_0 = arith.constant 0 : index
    %0 = vector.load %arg1[%c0, %c0_0] : memref<8x32xf32, #tpu.memory_space<vmem>>, vector<8x32xf32>
    %c0_1 = arith.constant 0 : index
    %c0_2 = arith.constant 0 : index
    %1 = vector.load %arg2[%c0_1, %c0_2] : memref<8x32xf32, #tpu.memory_space<vmem>>, vector<8x32xf32>
    %c0_3 = arith.constant 0 : index
    %c0_4 = arith.constant 0 : index
    %2 = vector.load %arg5[%c0_3, %c0_4] : memref<6x32xf32, #tpu.memory_space<vmem>>, vector<6x32xf32>
    %3 = tpu.iota {dimensions = array<i32: 0>} : vector<8x8xi32>
    %4 = tpu.iota {dimensions = array<i32: 1>} : vector<8x8xi32>
    %5 = arith.cmpi sgt, %4, %3 : vector<8x8xi32>
    %6 = vector.shape_cast %5 : vector<8x8xi1> to vector<1x8x8xi1>
    %c0_5 = arith.constant 0 : index
    %c0_6 = arith.constant 0 : index
    %c0_7 = arith.constant 0 : index
    %7 = vector.load %arg3[%c0_5, %c0_6, %c0_7] : memref<1x1x8xf32, #tpu.memory_space<vmem>>, vector<1x1x8xf32>
    %cst = arith.constant 0.000000e+00 : f32
    %8 = vector.broadcast %cst : f32 to vector<1x1x8xf32>
    %9 = arith.cmpf ogt, %7, %8 : vector<1x1x8xf32>
    %10 = vector.broadcast %9 : vector<1x1x8xi1> to vector<1x8x8xi1>
    %11 = arith.ori %6, %10 : vector<1x8x8xi1>
    %cst_8 = arith.constant -9.99999984E+17 : f32
    %cst_9 = arith.constant 0.000000e+00 : f32
    %12 = vector.broadcast %cst_8 : f32 to vector<1x8x8xf32>
    %13 = vector.broadcast %cst_9 : f32 to vector<1x8x8xf32>
    %14 = arith.select %11, %12, %13 : vector<1x8x8xi1>, vector<1x8x8xf32>
    %c0_10 = arith.constant 0 : index
    %c0_11 = arith.constant 0 : index
    %c0_12 = arith.constant 0 : index
    %15 = vector.load %arg4[%c0_10, %c0_11, %c0_12] : memref<1x1x8xf32, #tpu.memory_space<vmem>>, vector<1x1x8xf32>
    %cst_13 = arith.constant 0.000000e+00 : f32
    %16 = vector.broadcast %cst_13 : f32 to vector<1x1x8xf32>
    %17 = arith.cmpf ogt, %15, %16 : vector<1x1x8xf32>
    %cst_14 = arith.constant -9.99999984E+17 : f32
    %cst_15 = arith.constant 0.000000e+00 : f32
    %18 = vector.broadcast %cst_14 : f32 to vector<1x1x8xf32>
    %19 = vector.broadcast %cst_15 : f32 to vector<1x1x8xf32>
    %20 = arith.select %17, %18, %19 : vector<1x1x8xi1>, vector<1x1x8xf32>
    %21 = vector.extract_strided_slice %2 {offsets = [0, 0], sizes = [1, 32], strides = [1, 1]} : vector<6x32xf32> to vector<1x32xf32>
    %22 = vector.shape_cast %21 : vector<1x32xf32> to vector<32xf32>
    %23 = vector.extract_strided_slice %2 {offsets = [1, 0], sizes = [1, 32], strides = [1, 1]} : vector<6x32xf32> to vector<1x32xf32>
    %24 = vector.shape_cast %23 : vector<1x32xf32> to vector<32xf32>
    %cst_16 = arith.constant dense<0.000000e+00> : vector<8xf32>
    %25 = vector.multi_reduction <add>, %0, %cst_16 [1] : vector<8x32xf32> to vector<8xf32>
    %26 = vector.shape_cast %25 : vector<8xf32> to vector<8x1xf32>
    %cst_17 = arith.constant 3.200000e+01 : f32
    %27 = vector.broadcast %cst_17 : f32 to vector<8x1xf32>
    %28 = arith.divf %26, %27 : vector<8x1xf32>
    %29 = vector.broadcast %28 : vector<8x1xf32> to vector<8x32xf32>
    %30 = arith.subf %0, %29 : vector<8x32xf32>
    %31 = arith.mulf %30, %30 : vector<8x32xf32>
    %cst_18 = arith.constant dense<0.000000e+00> : vector<8xf32>
    %32 = vector.multi_reduction <add>, %31, %cst_18 [1] : vector<8x32xf32> to vector<8xf32>
    %33 = vector.shape_cast %32 : vector<8xf32> to vector<8x1xf32>
    %cst_19 = arith.constant 3.200000e+01 : f32
    %34 = vector.broadcast %cst_19 : f32 to vector<8x1xf32>
    %35 = arith.divf %33, %34 : vector<8x1xf32>
    %36 = vector.broadcast %28 : vector<8x1xf32> to vector<8x32xf32>
    %37 = arith.subf %0, %36 : vector<8x32xf32>
    %cst_20 = arith.constant 9.99999997E-7 : f32
    %38 = vector.broadcast %cst_20 : f32 to vector<8x1xf32>
    %39 = arith.addf %35, %38 : vector<8x1xf32>
    %40 = math.rsqrt %39 : vector<8x1xf32>
    %41 = vector.broadcast %40 : vector<8x1xf32> to vector<8x32xf32>
    %42 = arith.mulf %37, %41 : vector<8x32xf32>
    %43 = vector.shape_cast %22 : vector<32xf32> to vector<1x32xf32>
    %44 = vector.broadcast %43 : vector<1x32xf32> to vector<8x32xf32>
    %45 = arith.mulf %42, %44 : vector<8x32xf32>
    %46 = vector.shape_cast %24 : vector<32xf32> to vector<1x32xf32>
    %47 = vector.broadcast %46 : vector<1x32xf32> to vector<8x32xf32>
    %48 = arith.addf %45, %47 : vector<8x32xf32>
    %49 = arith.truncf %48 : vector<8x32xf32> to vector<8x32xbf16>
    %c0_21 = arith.constant 0 : index
    %c0_22 = arith.constant 0 : index
    %50 = vector.load %arg6[%c0_21, %c0_22] : memref<32x96xbf16, #tpu.memory_space<vmem>>, vector<32x96xbf16>
    %cst_23 = arith.constant dense<0.000000e+00> : vector<8x96xf32>
    %51 = tpu.matmul %49, %50, %cst_23 {dimension_numbers = #tpu.dot_dimension_numbers<[1], [0], [0], [1], [0, 0, 1, 1], [], []>} : vector<8x32xbf16>, vector<32x96xbf16>, vector<8x96xf32> -> vector<8x96xf32>
    %c0_24 = arith.constant 0 : index
    %c0_25 = arith.constant 0 : index
    %52 = vector.load %arg7[%c0_24, %c0_25] : memref<1x96xf32, #tpu.memory_space<vmem>>, vector<1x96xf32>
    %53 = vector.broadcast %52 : vector<1x96xf32> to vector<8x96xf32>
    %54 = arith.addf %51, %53 : vector<8x96xf32>
    %55 = vector.extract_strided_slice %54 {offsets = [0, 0], sizes = [8, 32], strides = [1, 1]} : vector<8x96xf32> to vector<8x32xf32>
    %cst_26 = arith.constant 0.353553385 : f32
    %56 = vector.broadcast %cst_26 : f32 to vector<8x32xf32>
    %57 = arith.mulf %55, %56 : vector<8x32xf32>
    %58 = vector.extract_strided_slice %54 {offsets = [0, 32], sizes = [8, 32], strides = [1, 1]} : vector<8x96xf32> to vector<8x32xf32>
    %59 = vector.extract_strided_slice %54 {offsets = [0, 64], sizes = [8, 32], strides = [1, 1]} : vector<8x96xf32> to vector<8x32xf32>
    %60 = vector.shape_cast %57 : vector<8x32xf32> to vector<1x8x32xf32>
    %61 = vector.extract_strided_slice %60 {offsets = [0, 0, 0], sizes = [1, 8, 8], strides = [1, 1, 1]} : vector<1x8x32xf32> to vector<1x8x8xf32>
    %62 = vector.extract_strided_slice %60 {offsets = [0, 0, 8], sizes = [1, 8, 8], strides = [1, 1, 1]} : vector<1x8x32xf32> to vector<1x8x8xf32>
    %63 = vector.extract_strided_slice %60 {offsets = [0, 0, 16], sizes = [1, 8, 8], strides = [1, 1, 1]} : vector<1x8x32xf32> to vector<1x8x8xf32>
    %64 = vector.extract_strided_slice %60 {offsets = [0, 0, 24], sizes = [1, 8, 8], strides = [1, 1, 1]} : vector<1x8x32xf32> to vector<1x8x8xf32>
    %65 = tpu.concatenate %61, %62, %63, %64 in 0 : vector<1x8x8xf32>, vector<1x8x8xf32>, vector<1x8x8xf32>, vector<1x8x8xf32> -> vector<4x8x8xf32>
    %66 = arith.truncf %65 : vector<4x8x8xf32> to vector<4x8x8xbf16>
    %67 = vector.shape_cast %58 : vector<8x32xf32> to vector<1x8x32xf32>
    %68 = vector.extract_strided_slice %67 {offsets = [0, 0, 0], sizes = [1, 8, 8], strides = [1, 1, 1]} : vector<1x8x32xf32> to vector<1x8x8xf32>
    %69 = vector.extract_strided_slice %67 {offsets = [0, 0, 8], sizes = [1, 8, 8], strides = [1, 1, 1]} : vector<1x8x32xf32> to vector<1x8x8xf32>
    %70 = vector.extract_strided_slice %67 {offsets = [0, 0, 16], sizes = [1, 8, 8], strides = [1, 1, 1]} : vector<1x8x32xf32> to vector<1x8x8xf32>
    %71 = vector.extract_strided_slice %67 {offsets = [0, 0, 24], sizes = [1, 8, 8], strides = [1, 1, 1]} : vector<1x8x32xf32> to vector<1x8x8xf32>
    %72 = tpu.concatenate %68, %69, %70, %71 in 0 : vector<1x8x8xf32>, vector<1x8x8xf32>, vector<1x8x8xf32>, vector<1x8x8xf32> -> vector<4x8x8xf32>
    %73 = arith.truncf %72 : vector<4x8x8xf32> to vector<4x8x8xbf16>
    %74 = vector.shape_cast %59 : vector<8x32xf32> to vector<1x8x32xf32>
    %75 = vector.extract_strided_slice %74 {offsets = [0, 0, 0], sizes = [1, 8, 8], strides = [1, 1, 1]} : vector<1x8x32xf32> to vector<1x8x8xf32>
    %76 = vector.extract_strided_slice %74 {offsets = [0, 0, 8], sizes = [1, 8, 8], strides = [1, 1, 1]} : vector<1x8x32xf32> to vector<1x8x8xf32>
    %77 = vector.extract_strided_slice %74 {offsets = [0, 0, 16], sizes = [1, 8, 8], strides = [1, 1, 1]} : vector<1x8x32xf32> to vector<1x8x8xf32>
    %78 = vector.extract_strided_slice %74 {offsets = [0, 0, 24], sizes = [1, 8, 8], strides = [1, 1, 1]} : vector<1x8x32xf32> to vector<1x8x8xf32>
    %79 = tpu.concatenate %75, %76, %77, %78 in 0 : vector<1x8x8xf32>, vector<1x8x8xf32>, vector<1x8x8xf32>, vector<1x8x8xf32> -> vector<4x8x8xf32>
    %80 = arith.truncf %79 : vector<4x8x8xf32> to vector<4x8x8xbf16>
    "tpu.trace_start"() <{level = 10 : i32, message = "bqd,bkd->bqk"}> : () -> ()
    %cst_27 = arith.constant dense<0.000000e+00> : vector<4x8x8xf32>
    %81 = tpu.matmul %66, %73, %cst_27 {dimension_numbers = #tpu.dot_dimension_numbers<[2], [2], [1], [1], [0, 0, 0, 1, 1, 1], [0], [0]>} : vector<4x8x8xbf16>, vector<4x8x8xbf16>, vector<4x8x8xf32> -> vector<4x8x8xf32>
    "tpu.trace_stop"() : () -> ()
    %82 = vector.shape_cast %81 : vector<4x8x8xf32> to vector<4x1x8x8xf32>
    %83 = vector.shape_cast %14 : vector<1x8x8xf32> to vector<1x1x8x8xf32>
    %84 = vector.broadcast %83 : vector<1x1x8x8xf32> to vector<4x1x8x8xf32>
    %85 = arith.addf %82, %84 : vector<4x1x8x8xf32>
    %cst_28 = arith.constant dense<0xFF800000> : vector<4x1x8xf32>
    %86 = vector.multi_reduction <maximumf>, %85, %cst_28 [3] : vector<4x1x8x8xf32> to vector<4x1x8xf32>
    %87 = vector.shape_cast %86 : vector<4x1x8xf32> to vector<4x1x8x1xf32>
    %88 = vector.broadcast %87 : vector<4x1x8x1xf32> to vector<4x1x8x8xf32>
    %89 = arith.subf %85, %88 : vector<4x1x8x8xf32>
    %90 = math.exp %89 : vector<4x1x8x8xf32>
    %cst_29 = arith.constant dense<0.000000e+00> : vector<4x1x8xf32>
    %91 = vector.multi_reduction <add>, %90, %cst_29 [3] : vector<4x1x8x8xf32> to vector<4x1x8xf32>
    %92 = vector.shape_cast %91 : vector<4x1x8xf32> to vector<4x1x8x1xf32>
    %93 = tpu.reciprocal %92 {approx = true} : vector<4x1x8x1xf32> -> vector<4x1x8x1xf32>
    %94 = vector.broadcast %93 : vector<4x1x8x1xf32> to vector<4x1x8x8xf32>
    %95 = arith.mulf %90, %94 : vector<4x1x8x8xf32>
    %96 = vector.shape_cast %95 : vector<4x1x8x8xf32> to vector<4x8x8xf32>
    %97 = arith.truncf %96 : vector<4x8x8xf32> to vector<4x8x8xbf16>
    "tpu.trace_start"() <{level = 10 : i32, message = "bqk,bkd->bqd"}> : () -> ()
    %cst_30 = arith.constant dense<0.000000e+00> : vector<4x8x8xf32>
    %98 = tpu.matmul %97, %80, %cst_30 {dimension_numbers = #tpu.dot_dimension_numbers<[2], [1], [1], [2], [0, 0, 0, 1, 1, 2], [0], [0]>} : vector<4x8x8xbf16>, vector<4x8x8xbf16>, vector<4x8x8xf32> -> vector<4x8x8xf32>
    "tpu.trace_stop"() : () -> ()
    %99 = vector.shape_cast %98 : vector<4x8x8xf32> to vector<4x1x8x8xf32>
    %c0_31 = arith.constant 0 : index
    %c0_32 = arith.constant 0 : index
    %c0_33 = arith.constant 0 : index
    %100 = vector.load %arg8[%c0_31, %c0_32, %c0_33] : memref<4x8x32xbf16, #tpu.memory_space<vmem>>, vector<4x8x32xbf16>
    %c0_34 = arith.constant 0 : index
    %c0_35 = arith.constant 0 : index
    %101 = vector.load %arg9[%c0_34, %c0_35] : memref<1x32xf32, #tpu.memory_space<vmem>>, vector<1x32xf32>
    %102 = vector.extract_strided_slice %99 {offsets = [0, 0, 0, 0], sizes = [1, 1, 8, 8], strides = [1, 1, 1, 1]} : vector<4x1x8x8xf32> to vector<1x1x8x8xf32>
    %103 = vector.shape_cast %102 : vector<1x1x8x8xf32> to vector<1x8x8xf32>
    %104 = vector.shape_cast %103 : vector<1x8x8xf32> to vector<8x8xf32>
    %105 = arith.truncf %104 : vector<8x8xf32> to vector<8x8xbf16>
    %106 = vector.extract_strided_slice %100 {offsets = [0, 0, 0], sizes = [1, 8, 32], strides = [1, 1, 1]} : vector<4x8x32xbf16> to vector<1x8x32xbf16>
    %107 = vector.shape_cast %106 : vector<1x8x32xbf16> to vector<8x32xbf16>
    %cst_36 = arith.constant dense<0.000000e+00> : vector<8x32xf32>
    %108 = tpu.matmul %105, %107, %cst_36 {dimension_numbers = #tpu.dot_dimension_numbers<[1], [0], [0], [1], [0, 0, 1, 1], [], []>} : vector<8x8xbf16>, vector<8x32xbf16>, vector<8x32xf32> -> vector<8x32xf32>
    %109 = vector.extract_strided_slice %99 {offsets = [1, 0, 0, 0], sizes = [1, 1, 8, 8], strides = [1, 1, 1, 1]} : vector<4x1x8x8xf32> to vector<1x1x8x8xf32>
    %110 = vector.shape_cast %109 : vector<1x1x8x8xf32> to vector<1x8x8xf32>
    %111 = vector.shape_cast %110 : vector<1x8x8xf32> to vector<8x8xf32>
    %112 = arith.truncf %111 : vector<8x8xf32> to vector<8x8xbf16>
    %113 = vector.extract_strided_slice %100 {offsets = [1, 0, 0], sizes = [1, 8, 32], strides = [1, 1, 1]} : vector<4x8x32xbf16> to vector<1x8x32xbf16>
    %114 = vector.shape_cast %113 : vector<1x8x32xbf16> to vector<8x32xbf16>
    %cst_37 = arith.constant dense<0.000000e+00> : vector<8x32xf32>
    %115 = tpu.matmul %112, %114, %cst_37 {dimension_numbers = #tpu.dot_dimension_numbers<[1], [0], [0], [1], [0, 0, 1, 1], [], []>} : vector<8x8xbf16>, vector<8x32xbf16>, vector<8x32xf32> -> vector<8x32xf32>
    %116 = arith.addf %108, %115 : vector<8x32xf32>
    %117 = vector.extract_strided_slice %99 {offsets = [2, 0, 0, 0], sizes = [1, 1, 8, 8], strides = [1, 1, 1, 1]} : vector<4x1x8x8xf32> to vector<1x1x8x8xf32>
    %118 = vector.shape_cast %117 : vector<1x1x8x8xf32> to vector<1x8x8xf32>
    %119 = vector.shape_cast %118 : vector<1x8x8xf32> to vector<8x8xf32>
    %120 = arith.truncf %119 : vector<8x8xf32> to vector<8x8xbf16>
    %121 = vector.extract_strided_slice %100 {offsets = [2, 0, 0], sizes = [1, 8, 32], strides = [1, 1, 1]} : vector<4x8x32xbf16> to vector<1x8x32xbf16>
    %122 = vector.shape_cast %121 : vector<1x8x32xbf16> to vector<8x32xbf16>
    %cst_38 = arith.constant dense<0.000000e+00> : vector<8x32xf32>
    %123 = tpu.matmul %120, %122, %cst_38 {dimension_numbers = #tpu.dot_dimension_numbers<[1], [0], [0], [1], [0, 0, 1, 1], [], []>} : vector<8x8xbf16>, vector<8x32xbf16>, vector<8x32xf32> -> vector<8x32xf32>
    %124 = arith.addf %116, %123 : vector<8x32xf32>
    %125 = vector.extract_strided_slice %99 {offsets = [3, 0, 0, 0], sizes = [1, 1, 8, 8], strides = [1, 1, 1, 1]} : vector<4x1x8x8xf32> to vector<1x1x8x8xf32>
    %126 = vector.shape_cast %125 : vector<1x1x8x8xf32> to vector<1x8x8xf32>
    %127 = vector.shape_cast %126 : vector<1x8x8xf32> to vector<8x8xf32>
    %128 = arith.truncf %127 : vector<8x8xf32> to vector<8x8xbf16>
    %129 = vector.extract_strided_slice %100 {offsets = [3, 0, 0], sizes = [1, 8, 32], strides = [1, 1, 1]} : vector<4x8x32xbf16> to vector<1x8x32xbf16>
    %130 = vector.shape_cast %129 : vector<1x8x32xbf16> to vector<8x32xbf16>
    %cst_39 = arith.constant dense<0.000000e+00> : vector<8x32xf32>
    %131 = tpu.matmul %128, %130, %cst_39 {dimension_numbers = #tpu.dot_dimension_numbers<[1], [0], [0], [1], [0, 0, 1, 1], [], []>} : vector<8x8xbf16>, vector<8x32xbf16>, vector<8x32xf32> -> vector<8x32xf32>
    %132 = arith.addf %124, %131 : vector<8x32xf32>
    %133 = vector.broadcast %101 : vector<1x32xf32> to vector<8x32xf32>
    %134 = arith.addf %132, %133 : vector<8x32xf32>
    %135 = arith.addf %134, %0 : vector<8x32xf32>
    %136 = vector.extract_strided_slice %2 {offsets = [2, 0], sizes = [1, 32], strides = [1, 1]} : vector<6x32xf32> to vector<1x32xf32>
    %137 = vector.shape_cast %136 : vector<1x32xf32> to vector<32xf32>
    %138 = vector.extract_strided_slice %2 {offsets = [3, 0], sizes = [1, 32], strides = [1, 1]} : vector<6x32xf32> to vector<1x32xf32>
    %139 = vector.shape_cast %138 : vector<1x32xf32> to vector<32xf32>
    %cst_40 = arith.constant dense<0.000000e+00> : vector<8xf32>
    %140 = vector.multi_reduction <add>, %135, %cst_40 [1] : vector<8x32xf32> to vector<8xf32>
    %141 = vector.shape_cast %140 : vector<8xf32> to vector<8x1xf32>
    %cst_41 = arith.constant 3.200000e+01 : f32
    %142 = vector.broadcast %cst_41 : f32 to vector<8x1xf32>
    %143 = arith.divf %141, %142 : vector<8x1xf32>
    %144 = vector.broadcast %143 : vector<8x1xf32> to vector<8x32xf32>
    %145 = arith.subf %135, %144 : vector<8x32xf32>
    %146 = arith.mulf %145, %145 : vector<8x32xf32>
    %cst_42 = arith.constant dense<0.000000e+00> : vector<8xf32>
    %147 = vector.multi_reduction <add>, %146, %cst_42 [1] : vector<8x32xf32> to vector<8xf32>
    %148 = vector.shape_cast %147 : vector<8xf32> to vector<8x1xf32>
    %cst_43 = arith.constant 3.200000e+01 : f32
    %149 = vector.broadcast %cst_43 : f32 to vector<8x1xf32>
    %150 = arith.divf %148, %149 : vector<8x1xf32>
    %151 = vector.broadcast %143 : vector<8x1xf32> to vector<8x32xf32>
    %152 = arith.subf %135, %151 : vector<8x32xf32>
    %cst_44 = arith.constant 9.99999997E-7 : f32
    %153 = vector.broadcast %cst_44 : f32 to vector<8x1xf32>
    %154 = arith.addf %150, %153 : vector<8x1xf32>
    %155 = math.rsqrt %154 : vector<8x1xf32>
    %156 = vector.broadcast %155 : vector<8x1xf32> to vector<8x32xf32>
    %157 = arith.mulf %152, %156 : vector<8x32xf32>
    %158 = vector.shape_cast %137 : vector<32xf32> to vector<1x32xf32>
    %159 = vector.broadcast %158 : vector<1x32xf32> to vector<8x32xf32>
    %160 = arith.mulf %157, %159 : vector<8x32xf32>
    %161 = vector.shape_cast %139 : vector<32xf32> to vector<1x32xf32>
    %162 = vector.broadcast %161 : vector<1x32xf32> to vector<8x32xf32>
    %163 = arith.addf %160, %162 : vector<8x32xf32>
    %164 = arith.truncf %163 : vector<8x32xf32> to vector<8x32xbf16>
    %c0_45 = arith.constant 0 : index
    %c0_46 = arith.constant 0 : index
    %165 = vector.load %arg10[%c0_45, %c0_46] : memref<32x32xbf16, #tpu.memory_space<vmem>>, vector<32x32xbf16>
    %cst_47 = arith.constant dense<0.000000e+00> : vector<8x32xf32>
    %166 = tpu.matmul %164, %165, %cst_47 {dimension_numbers = #tpu.dot_dimension_numbers<[1], [0], [0], [1], [0, 0, 1, 1], [], []>} : vector<8x32xbf16>, vector<32x32xbf16>, vector<8x32xf32> -> vector<8x32xf32>
    %c0_48 = arith.constant 0 : index
    %c0_49 = arith.constant 0 : index
    %167 = vector.load %arg11[%c0_48, %c0_49] : memref<1x32xf32, #tpu.memory_space<vmem>>, vector<1x32xf32>
    %168 = vector.broadcast %167 : vector<1x32xf32> to vector<8x32xf32>
    %169 = arith.addf %166, %168 : vector<8x32xf32>
    %cst_50 = arith.constant 0.353553385 : f32
    %170 = vector.broadcast %cst_50 : f32 to vector<8x32xf32>
    %171 = arith.mulf %169, %170 : vector<8x32xf32>
    %172 = arith.truncf %1 : vector<8x32xf32> to vector<8x32xbf16>
    %c0_51 = arith.constant 0 : index
    %c0_52 = arith.constant 0 : index
    %173 = vector.load %arg12[%c0_51, %c0_52] : memref<32x64xbf16, #tpu.memory_space<vmem>>, vector<32x64xbf16>
    %cst_53 = arith.constant dense<0.000000e+00> : vector<8x64xf32>
    %174 = tpu.matmul %172, %173, %cst_53 {dimension_numbers = #tpu.dot_dimension_numbers<[1], [0], [0], [1], [0, 0, 1, 1], [], []>} : vector<8x32xbf16>, vector<32x64xbf16>, vector<8x64xf32> -> vector<8x64xf32>
    %c0_54 = arith.constant 0 : index
    %c0_55 = arith.constant 0 : index
    %175 = vector.load %arg13[%c0_54, %c0_55] : memref<1x64xf32, #tpu.memory_space<vmem>>, vector<1x64xf32>
    %176 = vector.broadcast %175 : vector<1x64xf32> to vector<8x64xf32>
    %177 = arith.addf %174, %176 : vector<8x64xf32>
    %178 = vector.extract_strided_slice %177 {offsets = [0, 0], sizes = [8, 32], strides = [1, 1]} : vector<8x64xf32> to vector<8x32xf32>
    %179 = vector.extract_strided_slice %177 {offsets = [0, 32], sizes = [8, 32], strides = [1, 1]} : vector<8x64xf32> to vector<8x32xf32>
    %180 = vector.shape_cast %171 : vector<8x32xf32> to vector<1x8x32xf32>
    %181 = vector.extract_strided_slice %180 {offsets = [0, 0, 0], sizes = [1, 8, 8], strides = [1, 1, 1]} : vector<1x8x32xf32> to vector<1x8x8xf32>
    %182 = vector.extract_strided_slice %180 {offsets = [0, 0, 8], sizes = [1, 8, 8], strides = [1, 1, 1]} : vector<1x8x32xf32> to vector<1x8x8xf32>
    %183 = vector.extract_strided_slice %180 {offsets = [0, 0, 16], sizes = [1, 8, 8], strides = [1, 1, 1]} : vector<1x8x32xf32> to vector<1x8x8xf32>
    %184 = vector.extract_strided_slice %180 {offsets = [0, 0, 24], sizes = [1, 8, 8], strides = [1, 1, 1]} : vector<1x8x32xf32> to vector<1x8x8xf32>
    %185 = tpu.concatenate %181, %182, %183, %184 in 0 : vector<1x8x8xf32>, vector<1x8x8xf32>, vector<1x8x8xf32>, vector<1x8x8xf32> -> vector<4x8x8xf32>
    %186 = arith.truncf %185 : vector<4x8x8xf32> to vector<4x8x8xbf16>
    %187 = vector.shape_cast %178 : vector<8x32xf32> to vector<1x8x32xf32>
    %188 = vector.extract_strided_slice %187 {offsets = [0, 0, 0], sizes = [1, 8, 8], strides = [1, 1, 1]} : vector<1x8x32xf32> to vector<1x8x8xf32>
    %189 = vector.extract_strided_slice %187 {offsets = [0, 0, 8], sizes = [1, 8, 8], strides = [1, 1, 1]} : vector<1x8x32xf32> to vector<1x8x8xf32>
    %190 = vector.extract_strided_slice %187 {offsets = [0, 0, 16], sizes = [1, 8, 8], strides = [1, 1, 1]} : vector<1x8x32xf32> to vector<1x8x8xf32>
    %191 = vector.extract_strided_slice %187 {offsets = [0, 0, 24], sizes = [1, 8, 8], strides = [1, 1, 1]} : vector<1x8x32xf32> to vector<1x8x8xf32>
    %192 = tpu.concatenate %188, %189, %190, %191 in 0 : vector<1x8x8xf32>, vector<1x8x8xf32>, vector<1x8x8xf32>, vector<1x8x8xf32> -> vector<4x8x8xf32>
    %193 = arith.truncf %192 : vector<4x8x8xf32> to vector<4x8x8xbf16>
    %194 = vector.shape_cast %179 : vector<8x32xf32> to vector<1x8x32xf32>
    %195 = vector.extract_strided_slice %194 {offsets = [0, 0, 0], sizes = [1, 8, 8], strides = [1, 1, 1]} : vector<1x8x32xf32> to vector<1x8x8xf32>
    %196 = vector.extract_strided_slice %194 {offsets = [0, 0, 8], sizes = [1, 8, 8], strides = [1, 1, 1]} : vector<1x8x32xf32> to vector<1x8x8xf32>
    %197 = vector.extract_strided_slice %194 {offsets = [0, 0, 16], sizes = [1, 8, 8], strides = [1, 1, 1]} : vector<1x8x32xf32> to vector<1x8x8xf32>
    %198 = vector.extract_strided_slice %194 {offsets = [0, 0, 24], sizes = [1, 8, 8], strides = [1, 1, 1]} : vector<1x8x32xf32> to vector<1x8x8xf32>
    %199 = tpu.concatenate %195, %196, %197, %198 in 0 : vector<1x8x8xf32>, vector<1x8x8xf32>, vector<1x8x8xf32>, vector<1x8x8xf32> -> vector<4x8x8xf32>
    %200 = arith.truncf %199 : vector<4x8x8xf32> to vector<4x8x8xbf16>
    "tpu.trace_start"() <{level = 10 : i32, message = "bqd,bkd->bqk"}> : () -> ()
    %cst_56 = arith.constant dense<0.000000e+00> : vector<4x8x8xf32>
    %201 = tpu.matmul %186, %193, %cst_56 {dimension_numbers = #tpu.dot_dimension_numbers<[2], [2], [1], [1], [0, 0, 0, 1, 1, 1], [0], [0]>} : vector<4x8x8xbf16>, vector<4x8x8xbf16>, vector<4x8x8xf32> -> vector<4x8x8xf32>
    "tpu.trace_stop"() : () -> ()
    %202 = vector.shape_cast %201 : vector<4x8x8xf32> to vector<4x1x8x8xf32>
    %203 = vector.shape_cast %20 : vector<1x1x8xf32> to vector<1x1x1x8xf32>
    %204 = vector.broadcast %203 : vector<1x1x1x8xf32> to vector<4x1x8x8xf32>
    %205 = arith.addf %202, %204 : vector<4x1x8x8xf32>
    %cst_57 = arith.constant dense<0xFF800000> : vector<4x1x8xf32>
    %206 = vector.multi_reduction <maximumf>, %205, %cst_57 [3] : vector<4x1x8x8xf32> to vector<4x1x8xf32>
    %207 = vector.shape_cast %206 : vector<4x1x8xf32> to vector<4x1x8x1xf32>
    %208 = vector.broadcast %207 : vector<4x1x8x1xf32> to vector<4x1x8x8xf32>
    %209 = arith.subf %205, %208 : vector<4x1x8x8xf32>
    %210 = math.exp %209 : vector<4x1x8x8xf32>
    %cst_58 = arith.constant dense<0.000000e+00> : vector<4x1x8xf32>
    %211 = vector.multi_reduction <add>, %210, %cst_58 [3] : vector<4x1x8x8xf32> to vector<4x1x8xf32>
    %212 = vector.shape_cast %211 : vector<4x1x8xf32> to vector<4x1x8x1xf32>
    %213 = tpu.reciprocal %212 {approx = true} : vector<4x1x8x1xf32> -> vector<4x1x8x1xf32>
    %214 = vector.broadcast %213 : vector<4x1x8x1xf32> to vector<4x1x8x8xf32>
    %215 = arith.mulf %210, %214 : vector<4x1x8x8xf32>
    %216 = vector.extract_strided_slice %210 {offsets = [0, 0, 0, 0], sizes = [1, 1, 8, 8], strides = [1, 1, 1, 1]} : vector<4x1x8x8xf32> to vector<1x1x8x8xf32>
    %217 = vector.shape_cast %216 : vector<1x1x8x8xf32> to vector<1x8x8xf32>
    %218 = vector.extract_strided_slice %212 {offsets = [0, 0, 0, 0], sizes = [1, 1, 8, 1], strides = [1, 1, 1, 1]} : vector<4x1x8x1xf32> to vector<1x1x8x1xf32>
    %219 = vector.shape_cast %218 : vector<1x1x8x1xf32> to vector<1x8x1xf32>
    %220 = vector.broadcast %219 : vector<1x8x1xf32> to vector<1x8x8xf32>
    %221 = arith.divf %217, %220 : vector<1x8x8xf32>
    %222 = vector.shape_cast %221 : vector<1x8x8xf32> to vector<8x8xf32>
    %223 = vector.shape_cast %215 : vector<4x1x8x8xf32> to vector<4x8x8xf32>
    %224 = arith.truncf %223 : vector<4x8x8xf32> to vector<4x8x8xbf16>
    "tpu.trace_start"() <{level = 10 : i32, message = "bqk,bkd->bqd"}> : () -> ()
    %cst_59 = arith.constant dense<0.000000e+00> : vector<4x8x8xf32>
    %225 = tpu.matmul %224, %200, %cst_59 {dimension_numbers = #tpu.dot_dimension_numbers<[2], [1], [1], [2], [0, 0, 0, 1, 1, 2], [0], [0]>} : vector<4x8x8xbf16>, vector<4x8x8xbf16>, vector<4x8x8xf32> -> vector<4x8x8xf32>
    "tpu.trace_stop"() : () -> ()
    %226 = vector.shape_cast %225 : vector<4x8x8xf32> to vector<4x1x8x8xf32>
    %c0_60 = arith.constant 0 : index
    %c0_61 = arith.constant 0 : index
    %c0_62 = arith.constant 0 : index
    %227 = vector.load %arg14[%c0_60, %c0_61, %c0_62] : memref<4x8x32xbf16, #tpu.memory_space<vmem>>, vector<4x8x32xbf16>
    %c0_63 = arith.constant 0 : index
    %c0_64 = arith.constant 0 : index
    %228 = vector.load %arg15[%c0_63, %c0_64] : memref<1x32xf32, #tpu.memory_space<vmem>>, vector<1x32xf32>
    %229 = vector.extract_strided_slice %226 {offsets = [0, 0, 0, 0], sizes = [1, 1, 8, 8], strides = [1, 1, 1, 1]} : vector<4x1x8x8xf32> to vector<1x1x8x8xf32>
    %230 = vector.shape_cast %229 : vector<1x1x8x8xf32> to vector<1x8x8xf32>
    %231 = vector.shape_cast %230 : vector<1x8x8xf32> to vector<8x8xf32>
    %232 = arith.truncf %231 : vector<8x8xf32> to vector<8x8xbf16>
    %233 = vector.extract_strided_slice %227 {offsets = [0, 0, 0], sizes = [1, 8, 32], strides = [1, 1, 1]} : vector<4x8x32xbf16> to vector<1x8x32xbf16>
    %234 = vector.shape_cast %233 : vector<1x8x32xbf16> to vector<8x32xbf16>
    %cst_65 = arith.constant dense<0.000000e+00> : vector<8x32xf32>
    %235 = tpu.matmul %232, %234, %cst_65 {dimension_numbers = #tpu.dot_dimension_numbers<[1], [0], [0], [1], [0, 0, 1, 1], [], []>} : vector<8x8xbf16>, vector<8x32xbf16>, vector<8x32xf32> -> vector<8x32xf32>
    %236 = vector.extract_strided_slice %226 {offsets = [1, 0, 0, 0], sizes = [1, 1, 8, 8], strides = [1, 1, 1, 1]} : vector<4x1x8x8xf32> to vector<1x1x8x8xf32>
    %237 = vector.shape_cast %236 : vector<1x1x8x8xf32> to vector<1x8x8xf32>
    %238 = vector.shape_cast %237 : vector<1x8x8xf32> to vector<8x8xf32>
    %239 = arith.truncf %238 : vector<8x8xf32> to vector<8x8xbf16>
    %240 = vector.extract_strided_slice %227 {offsets = [1, 0, 0], sizes = [1, 8, 32], strides = [1, 1, 1]} : vector<4x8x32xbf16> to vector<1x8x32xbf16>
    %241 = vector.shape_cast %240 : vector<1x8x32xbf16> to vector<8x32xbf16>
    %cst_66 = arith.constant dense<0.000000e+00> : vector<8x32xf32>
    %242 = tpu.matmul %239, %241, %cst_66 {dimension_numbers = #tpu.dot_dimension_numbers<[1], [0], [0], [1], [0, 0, 1, 1], [], []>} : vector<8x8xbf16>, vector<8x32xbf16>, vector<8x32xf32> -> vector<8x32xf32>
    %243 = arith.addf %235, %242 : vector<8x32xf32>
    %244 = vector.extract_strided_slice %226 {offsets = [2, 0, 0, 0], sizes = [1, 1, 8, 8], strides = [1, 1, 1, 1]} : vector<4x1x8x8xf32> to vector<1x1x8x8xf32>
    %245 = vector.shape_cast %244 : vector<1x1x8x8xf32> to vector<1x8x8xf32>
    %246 = vector.shape_cast %245 : vector<1x8x8xf32> to vector<8x8xf32>
    %247 = arith.truncf %246 : vector<8x8xf32> to vector<8x8xbf16>
    %248 = vector.extract_strided_slice %227 {offsets = [2, 0, 0], sizes = [1, 8, 32], strides = [1, 1, 1]} : vector<4x8x32xbf16> to vector<1x8x32xbf16>
    %249 = vector.shape_cast %248 : vector<1x8x32xbf16> to vector<8x32xbf16>
    %cst_67 = arith.constant dense<0.000000e+00> : vector<8x32xf32>
    %250 = tpu.matmul %247, %249, %cst_67 {dimension_numbers = #tpu.dot_dimension_numbers<[1], [0], [0], [1], [0, 0, 1, 1], [], []>} : vector<8x8xbf16>, vector<8x32xbf16>, vector<8x32xf32> -> vector<8x32xf32>
    %251 = arith.addf %243, %250 : vector<8x32xf32>
    %252 = vector.extract_strided_slice %226 {offsets = [3, 0, 0, 0], sizes = [1, 1, 8, 8], strides = [1, 1, 1, 1]} : vector<4x1x8x8xf32> to vector<1x1x8x8xf32>
    %253 = vector.shape_cast %252 : vector<1x1x8x8xf32> to vector<1x8x8xf32>
    %254 = vector.shape_cast %253 : vector<1x8x8xf32> to vector<8x8xf32>
    %255 = arith.truncf %254 : vector<8x8xf32> to vector<8x8xbf16>
    %256 = vector.extract_strided_slice %227 {offsets = [3, 0, 0], sizes = [1, 8, 32], strides = [1, 1, 1]} : vector<4x8x32xbf16> to vector<1x8x32xbf16>
    %257 = vector.shape_cast %256 : vector<1x8x32xbf16> to vector<8x32xbf16>
    %cst_68 = arith.constant dense<0.000000e+00> : vector<8x32xf32>
    %258 = tpu.matmul %255, %257, %cst_68 {dimension_numbers = #tpu.dot_dimension_numbers<[1], [0], [0], [1], [0, 0, 1, 1], [], []>} : vector<8x8xbf16>, vector<8x32xbf16>, vector<8x32xf32> -> vector<8x32xf32>
    %259 = arith.addf %251, %258 : vector<8x32xf32>
    %260 = vector.broadcast %228 : vector<1x32xf32> to vector<8x32xf32>
    %261 = arith.addf %259, %260 : vector<8x32xf32>
    %262 = arith.addf %261, %135 : vector<8x32xf32>
    %263 = vector.extract_strided_slice %2 {offsets = [4, 0], sizes = [1, 32], strides = [1, 1]} : vector<6x32xf32> to vector<1x32xf32>
    %264 = vector.shape_cast %263 : vector<1x32xf32> to vector<32xf32>
    %265 = vector.extract_strided_slice %2 {offsets = [5, 0], sizes = [1, 32], strides = [1, 1]} : vector<6x32xf32> to vector<1x32xf32>
    %266 = vector.shape_cast %265 : vector<1x32xf32> to vector<32xf32>
    %cst_69 = arith.constant dense<0.000000e+00> : vector<8xf32>
    %267 = vector.multi_reduction <add>, %262, %cst_69 [1] : vector<8x32xf32> to vector<8xf32>
    %268 = vector.shape_cast %267 : vector<8xf32> to vector<8x1xf32>
    %cst_70 = arith.constant 3.200000e+01 : f32
    %269 = vector.broadcast %cst_70 : f32 to vector<8x1xf32>
    %270 = arith.divf %268, %269 : vector<8x1xf32>
    %271 = vector.broadcast %270 : vector<8x1xf32> to vector<8x32xf32>
    %272 = arith.subf %262, %271 : vector<8x32xf32>
    %273 = arith.mulf %272, %272 : vector<8x32xf32>
    %cst_71 = arith.constant dense<0.000000e+00> : vector<8xf32>
    %274 = vector.multi_reduction <add>, %273, %cst_71 [1] : vector<8x32xf32> to vector<8xf32>
    %275 = vector.shape_cast %274 : vector<8xf32> to vector<8x1xf32>
    %cst_72 = arith.constant 3.200000e+01 : f32
    %276 = vector.broadcast %cst_72 : f32 to vector<8x1xf32>
    %277 = arith.divf %275, %276 : vector<8x1xf32>
    %278 = vector.broadcast %270 : vector<8x1xf32> to vector<8x32xf32>
    %279 = arith.subf %262, %278 : vector<8x32xf32>
    %cst_73 = arith.constant 9.99999997E-7 : f32
    %280 = vector.broadcast %cst_73 : f32 to vector<8x1xf32>
    %281 = arith.addf %277, %280 : vector<8x1xf32>
    %282 = math.rsqrt %281 : vector<8x1xf32>
    %283 = vector.broadcast %282 : vector<8x1xf32> to vector<8x32xf32>
    %284 = arith.mulf %279, %283 : vector<8x32xf32>
    %285 = vector.shape_cast %264 : vector<32xf32> to vector<1x32xf32>
    %286 = vector.broadcast %285 : vector<1x32xf32> to vector<8x32xf32>
    %287 = arith.mulf %284, %286 : vector<8x32xf32>
    %288 = vector.shape_cast %266 : vector<32xf32> to vector<1x32xf32>
    %289 = vector.broadcast %288 : vector<1x32xf32> to vector<8x32xf32>
    %290 = arith.addf %287, %289 : vector<8x32xf32>
    %291 = arith.truncf %290 : vector<8x32xf32> to vector<8x32xbf16>
    %c0_74 = arith.constant 0 : index
    %c0_75 = arith.constant 0 : index
    %292 = vector.load %arg16[%c0_74, %c0_75] : memref<32x64xbf16, #tpu.memory_space<vmem>>, vector<32x64xbf16>
    %cst_76 = arith.constant dense<0.000000e+00> : vector<8x64xf32>
    %293 = tpu.matmul %291, %292, %cst_76 {dimension_numbers = #tpu.dot_dimension_numbers<[1], [0], [0], [1], [0, 0, 1, 1], [], []>} : vector<8x32xbf16>, vector<32x64xbf16>, vector<8x64xf32> -> vector<8x64xf32>
    %c0_77 = arith.constant 0 : index
    %c0_78 = arith.constant 0 : index
    %294 = vector.load %arg17[%c0_77, %c0_78] : memref<1x64xf32, #tpu.memory_space<vmem>>, vector<1x64xf32>
    %295 = vector.broadcast %294 : vector<1x64xf32> to vector<8x64xf32>
    %296 = arith.addf %293, %295 : vector<8x64xf32>
    %cst_79 = arith.constant 0.000000e+00 : f32
    %297 = vector.broadcast %cst_79 : f32 to vector<8x64xf32>
    %298 = arith.maximumf %296, %297 : vector<8x64xf32>
    %299 = arith.truncf %298 : vector<8x64xf32> to vector<8x64xbf16>
    %c0_80 = arith.constant 0 : index
    %c0_81 = arith.constant 0 : index
    %300 = vector.load %arg18[%c0_80, %c0_81] : memref<64x32xbf16, #tpu.memory_space<vmem>>, vector<64x32xbf16>
    %cst_82 = arith.constant dense<0.000000e+00> : vector<8x32xf32>
    %301 = tpu.matmul %299, %300, %cst_82 {dimension_numbers = #tpu.dot_dimension_numbers<[1], [0], [0], [1], [0, 0, 1, 1], [], []>} : vector<8x64xbf16>, vector<64x32xbf16>, vector<8x32xf32> -> vector<8x32xf32>
    %c0_83 = arith.constant 0 : index
    %c0_84 = arith.constant 0 : index
    %302 = vector.load %arg19[%c0_83, %c0_84] : memref<1x32xf32, #tpu.memory_space<vmem>>, vector<1x32xf32>
    %303 = vector.broadcast %302 : vector<1x32xf32> to vector<8x32xf32>
    %304 = arith.addf %301, %303 : vector<8x32xf32>
    %305 = arith.addf %304, %262 : vector<8x32xf32>
    %cst_85 = arith.constant 0.000000e+00 : f32
    %306 = vector.broadcast %cst_85 : f32 to vector<8x56xf32>
    %307 = tpu.concatenate %305, %163, %222, %306 in 1 : vector<8x32xf32>, vector<8x32xf32>, vector<8x8xf32>, vector<8x56xf32> -> vector<8x128xf32>
    %c0_86 = arith.constant 0 : index
    %c0_87 = arith.constant 0 : index
    %308 = vector.load %arg20[%c0_86, %c0_87] : memref<8x128xf32, #tpu.memory_space<vmem>>, vector<8x128xf32>
    tpu.vector_store %arg20[%c0_86, %c0_87], %307 {strides = array<i32>} : memref<8x128xf32, #tpu.memory_space<vmem>>, vector<8x128xf32>,
    return
  }
  func.func @transform_0(%arg0: i32) -> (i32, i32) {
    %c0_i32 = arith.constant 0 : i32
    %c0_i32_0 = arith.constant 0 : i32
    return %arg0, %c0_i32 : i32, i32
  }
  func.func @transform_1(%arg0: i32) -> (i32, i32) {
    %c0_i32 = arith.constant 0 : i32
    %c0_i32_0 = arith.constant 0 : i32
    return %arg0, %c0_i32 : i32, i32
  }
  func.func @transform_2(%arg0: i32) -> (i32, i32, i32) {
    %c0_i32 = arith.constant 0 : i32
    %c0_i32_0 = arith.constant 0 : i32
    %c0_i32_1 = arith.constant 0 : i32
    return %arg0, %c0_i32, %c0_i32_0 : i32, i32, i32
  }
  func.func @transform_3(%arg0: i32) -> (i32, i32, i32) {
    %c0_i32 = arith.constant 0 : i32
    %c0_i32_0 = arith.constant 0 : i32
    %c0_i32_1 = arith.constant 0 : i32
    return %arg0, %c0_i32, %c0_i32_0 : i32, i32, i32
  }
  func.func @transform_4(%arg0: i32) -> (i32, i32) {
    %c0_i32 = arith.constant 0 : i32
    %c0_i32_0 = arith.constant 0 : i32
    %c0_i32_1 = arith.constant 0 : i32
    return %c0_i32, %c0_i32_0 : i32, i32
  }
  func.func @transform_5(%arg0: i32) -> (i32, i32) {
    %c0_i32 = arith.constant 0 : i32
    %c0_i32_0 = arith.constant 0 : i32
    %c0_i32_1 = arith.constant 0 : i32
    return %c0_i32, %c0_i32_0 : i32, i32
  }
  func.func @transform_6(%arg0: i32) -> (i32, i32) {
    %c0_i32 = arith.constant 0 : i32
    %c0_i32_0 = arith.constant 0 : i32
    %c0_i32_1 = arith.constant 0 : i32
    return %c0_i32, %c0_i32_0 : i32, i32
  }
  func.func @transform_7(%arg0: i32) -> (i32, i32, i32) {
    %c0_i32 = arith.constant 0 : i32
    %c0_i32_0 = arith.constant 0 : i32
    %c0_i32_1 = arith.constant 0 : i32
    %c0_i32_2 = arith.constant 0 : i32
    return %c0_i32, %c0_i32_0, %c0_i32_1 : i32, i32, i32
  }
  func.func @transform_8(%arg0: i32) -> (i32, i32) {
    %c0_i32 = arith.constant 0 : i32
    %c0_i32_0 = arith.constant 0 : i32
    %c0_i32_1 = arith.constant 0 : i32
    return %c0_i32, %c0_i32_0 : i32, i32
  }
  func.func @transform_9(%arg0: i32) -> (i32, i32) {
    %c0_i32 = arith.constant 0 : i32
    %c0_i32_0 = arith.constant 0 : i32
    %c0_i32_1 = arith.constant 0 : i32
    return %c0_i32, %c0_i32_0 : i32, i32
  }
  func.func @transform_10(%arg0: i32) -> (i32, i32) {
    %c0_i32 = arith.constant 0 : i32
    %c0_i32_0 = arith.constant 0 : i32
    %c0_i32_1 = arith.constant 0 : i32
    return %c0_i32, %c0_i32_0 : i32, i32
  }
  func.func @transform_11(%arg0: i32) -> (i32, i32) {
    %c0_i32 = arith.constant 0 : i32
    %c0_i32_0 = arith.constant 0 : i32
    %c0_i32_1 = arith.constant 0 : i32
    return %c0_i32, %c0_i32_0 : i32, i32
  }
  func.func @transform_12(%arg0: i32) -> (i32, i32) {
    %c0_i32 = arith.constant 0 : i32
    %c0_i32_0 = arith.constant 0 : i32
    %c0_i32_1 = arith.constant 0 : i32
    return %c0_i32, %c0_i32_0 : i32, i32
  }
  func.func @transform_13(%arg0: i32) -> (i32, i32, i32) {
    %c0_i32 = arith.constant 0 : i32
    %c0_i32_0 = arith.constant 0 : i32
    %c0_i32_1 = arith.constant 0 : i32
    %c0_i32_2 = arith.constant 0 : i32
    return %c0_i32, %c0_i32_0, %c0_i32_1 : i32, i32, i32
  }
  func.func @transform_14(%arg0: i32) -> (i32, i32) {
    %c0_i32 = arith.constant 0 : i32
    %c0_i32_0 = arith.constant 0 : i32
    %c0_i32_1 = arith.constant 0 : i32
    return %c0_i32, %c0_i32_0 : i32, i32
  }
  func.func @transform_15(%arg0: i32) -> (i32, i32) {
    %c0_i32 = arith.constant 0 : i32
    %c0_i32_0 = arith.constant 0 : i32
    %c0_i32_1 = arith.constant 0 : i32
    return %c0_i32, %c0_i32_0 : i32, i32
  }
  func.func @transform_16(%arg0: i32) -> (i32, i32) {
    %c0_i32 = arith.constant 0 : i32
    %c0_i32_0 = arith.constant 0 : i32
    %c0_i32_1 = arith.constant 0 : i32
    return %c0_i32, %c0_i32_0 : i32, i32
  }
  func.func @transform_17(%arg0: i32) -> (i32, i32) {
    %c0_i32 = arith.constant 0 : i32
    %c0_i32_0 = arith.constant 0 : i32
    %c0_i32_1 = arith.constant 0 : i32
    return %c0_i32, %c0_i32_0 : i32, i32
  }
  func.func @transform_18(%arg0: i32) -> (i32, i32) {
    %c0_i32 = arith.constant 0 : i32
    %c0_i32_0 = arith.constant 0 : i32
    %c0_i32_1 = arith.constant 0 : i32
    return %c0_i32, %c0_i32_0 : i32, i32
  }
  func.func @transform_19(%arg0: i32) -> (i32, i32) {
    %c0_i32 = arith.constant 0 : i32
    %c0_i32_0 = arith.constant 0 : i32
    return %arg0, %c0_i32 : i32, i32
  }
}

</mosaic_0001>

<llo_original>
// kernel: tpu_custom_call.1
$region0: #{tpu_custom_call.1}
  #allocation0 [shape = 'u32[]', space=smem, size = 0x4, offset = 0x4, fixed_abs, tag = 'smem constant byte address 0x4 - core index']
  #allocation1 [shape = 'u32[72,128]{1,0:T(1,128)}', space=vmem, size = 0x9000, scoped, tag = 'internal scratch']
  %s0 = inlined_call_operand.vmem [shape: f32[16,32], index: 0, kind: input, shape index: {}]
  %s1 = inlined_call_operand.vmem [shape: f32[16,32], index: 1, kind: input, shape index: {}]
  %s2 = inlined_call_operand.hbm [shape: f32[2,1,8], index: 2, kind: input, shape index: {}]
  %s3 = inlined_call_operand.hbm [shape: f32[2,1,8], index: 3, kind: input, shape index: {}]
  %s4 = inlined_call_operand.hbm [shape: f32[6,32], index: 4, kind: input, shape index: {}]
  %s5 = inlined_call_operand.vmem [shape: bf16[32,96], index: 5, kind: input, shape index: {}]
  %s6 = inlined_call_operand.hbm [shape: f32[1,96], index: 6, kind: input, shape index: {}]
  %s7 = inlined_call_operand.hbm [shape: bf16[4,8,32], index: 7, kind: input, shape index: {}]
  %s8 = inlined_call_operand.hbm [shape: f32[1,32], index: 8, kind: input, shape index: {}]
  %s9 = inlined_call_operand.hbm [shape: bf16[32,32], index: 9, kind: input, shape index: {}]
  %s10 = inlined_call_operand.hbm [shape: f32[1,32], index: 10, kind: input, shape index: {}]
  %s11 = inlined_call_operand.hbm [shape: bf16[32,64], index: 11, kind: input, shape index: {}]
  %s12 = inlined_call_operand.hbm [shape: f32[1,64], index: 12, kind: input, shape index: {}]
  %s13 = inlined_call_operand.hbm [shape: bf16[4,8,32], index: 13, kind: input, shape index: {}]
  %s14 = inlined_call_operand.hbm [shape: f32[1,32], index: 14, kind: input, shape index: {}]
  %s15 = inlined_call_operand.hbm [shape: bf16[32,64], index: 15, kind: input, shape index: {}]
  %s16 = inlined_call_operand.hbm [shape: f32[1,64], index: 16, kind: input, shape index: {}]
  %s17 = inlined_call_operand.vmem [shape: bf16[64,32], index: 17, kind: input, shape index: {}]
  %s18 = inlined_call_operand.vmem [shape: f32[1,32], index: 18, kind: input, shape index: {}]
  %s19 = inlined_call_operand.hbm [shape: f32[16,128], index: 19, kind: output, shape index: {}]
  %s20 = sld [smem:[#allocation0]]
  $region165: #{tpu_custom_call.1} parent=0
    _
  %s22 = ssub.s32 1, %s20
  %s23 = scalar_select 0, %s22, %s20
  $region1: #{tpu_custom_call.1} parent=0
    #allocation2 [shape = 'u8[1024]{0}', space=vmem, size = 0x400, scoped, tag = 'input window, operand 2']
    #allocation3 [shape = 's32[2]{0}', space=sflag, size = 0x8, scoped, tag = 'scoped memory for tpu_custom_call.1']
    #allocation4 [shape = 's32[2]{0}', space=sflag, size = 0x8, scoped, tag = 'scoped memory for tpu_custom_call.1']
    #allocation5 [shape = 'u8[1024]{0}', space=vmem, size = 0x400, scoped, tag = 'input window, operand 3']
    #allocation6 [shape = 's32[2]{0}', space=sflag, size = 0x8, scoped, tag = 'scoped memory for tpu_custom_call.1']
    #allocation7 [shape = 'u8[4096]{0}', space=vmem, size = 0x1000, scoped, tag = 'input window, operand 4, single buffered']
    #allocation8 [shape = 'u8[512]{0}', space=vmem, size = 0x400, scoped, tag = 'input window, operand 6, single buffered']
    #allocation9 [shape = 's32[1]{0}', space=sflag, size = 0x4, scoped, tag = 'scoped memory for tpu_custom_call.1']
    #allocation10 [shape = 'u8[8192]{0}', space=vmem, size = 0x2000, scoped, tag = 'input window, operand 7, single buffered']
    #allocation11 [shape = 'u8[512]{0}', space=vmem, size = 0x400, scoped, tag = 'input window, operand 8, single buffered']
    #allocation12 [shape = 's32[1]{0}', space=sflag, size = 0x4, scoped, tag = 'scoped memory for tpu_custom_call.1']
    #allocation13 [shape = 'u8[8192]{0}', space=vmem, size = 0x2000, scoped, tag = 'input window, operand 9, single buffered']
    #allocation14 [shape = 'u8[512]{0}', space=vmem, size = 0x400, scoped, tag = 'input window, operand 10, single buffered']
    #allocation15 [shape = 's32[1]{0}', space=sflag, size = 0x4, scoped, tag = 'scoped memory for tpu_custom_call.1']
    #allocation16 [shape = 'u8[8192]{0}', space=vmem, size = 0x2000, scoped, tag = 'input window, operand 11, single buffered']
    #allocation17 [shape = 'u8[512]{0}', space=vmem, size = 0x400, scoped, tag = 'input window, operand 12, single buffered']
    #allocation18 [shape = 's32[1]{0}', space=sflag, size = 0x4, scoped, tag = 'scoped memory for tpu_custom_call.1']
    #allocation19 [shape = 'u8[8192]{0}', space=vmem, size = 0x2000, scoped, tag = 'input window, operand 13, single buffered']
    #allocation20 [shape = 'u8[512]{0}', space=vmem, size = 0x400, scoped, tag = 'input window, operand 14, single buffered']
    #allocation21 [shape = 's32[1]{0}', space=sflag, size = 0x4, scoped, tag = 'scoped memory for tpu_custom_call.1']
    #allocation22 [shape = 'u8[8192]{0}', space=vmem, size = 0x2000, scoped, tag = 'input window, operand 15, single buffered']
    #allocation23 [shape = 'u8[512]{0}', space=vmem, size = 0x400, scoped, tag = 'input window, operand 16, single buffered']
    #allocation24 [shape = 's32[1]{0}', space=sflag, size = 0x4, scoped, tag = 'scoped memory for tpu_custom_call.1']
    #allocation25 [shape = 'u8[8192]{0}', space=vmem, size = 0x2000, scoped, tag = 'output window, operand 0']
    %24 = vsyncpa [#allocation3], 0
    %s25 = scalar_lea.sflag [#allocation3], 1
    %26 = vsyncpa %s25, 0
    %27 = vsyncpa [#allocation6], 0
    %s28 = scalar_lea.sflag [#allocation6], 1
    %29 = vsyncpa %s28, 0
    %30 = vsyncpa [#allocation9], 0
    %31 = vsyncpa [#allocation12], 0
    %32 = vsyncpa [#allocation15], 0
    %33 = vsyncpa [#allocation18], 0
    %34 = vsyncpa [#allocation21], 0
    %35 = vsyncpa [#allocation24], 0
    %36 = vsyncpa [#allocation4], 0
    %s37 = scalar_lea.sflag [#allocation4], 1
    %38 = vsyncpa %s37, 0
    loop: start=0, step=1, limit=4
    $region2: #{tpu_custom_call.1} parent=1 // loop_pre_header
      _
    $region3: #{tpu_custom_call.1} parent=1 // loop_header
      %s40 = sphi 0, %s44
      %p41 = scmp.ge.s32.totalorder %s40, 4
      %s50 = sphi 0, %s52
      %s53 = sphi 0, %s50
      %s54 = sphi 0, %s53
      %s70 = sphi 0, %s54
      %s76 = sphi 0, %s78
      %s79 = sphi 0, %s76
      %s80 = sphi 0, %s79
      %s96 = sphi 0, %s80
      %s102 = sphi 0, %s104
      %s105 = sphi 0, %s102
      %s106 = sphi 0, %s105
      %s122 = sphi 0, %s106
      %s128 = sphi 0, %s130
      %s131 = sphi 0, %s128
      %s132 = sphi 0, %s131
      %s148 = sphi 0, %s132
      %s152 = sphi 0, %s152
      %s154 = sphi 0, %s152
      %s155 = sphi 0, %s154
      %s169 = sphi 0, %s155
      %s173 = sphi 0, %s173
      %s175 = sphi 0, %s173
      %s176 = sphi 0, %s175
      %s190 = sphi 0, %s176
      %s194 = sphi 0, %s194
      %s196 = sphi 0, %s194
      %s197 = sphi 0, %s196
      %s211 = sphi 0, %s197
      %s215 = sphi 0, %s215
      %s217 = sphi 0, %s215
      %s218 = sphi 0, %s217
      %s232 = sphi 0, %s218
      %s236 = sphi 0, %s236
      %s238 = sphi 0, %s236
      %s239 = sphi 0, %s238
      %s253 = sphi 0, %s239
      %s257 = sphi 0, %s257
      %s259 = sphi 0, %s257
      %s260 = sphi 0, %s259
      %s274 = sphi 0, %s260
      %s278 = sphi 0, %s278
      %s280 = sphi 0, %s278
      %s281 = sphi 0, %s280
      %s295 = sphi 0, %s281
      %s299 = sphi 0, %s299
      %s301 = sphi 0, %s299
      %s302 = sphi 0, %s301
      %s316 = sphi 0, %s302
      %s320 = sphi 0, %s320
      %s322 = sphi 0, %s320
      %s323 = sphi 0, %s322
      %s337 = sphi 0, %s323
      %s341 = sphi 0, %s341
      %s343 = sphi 0, %s341
      %s344 = sphi 0, %s343
      %s358 = sphi 0, %s344
      %s362 = sphi 0, %s362
      %s364 = sphi 0, %s362
      %s365 = sphi 0, %s364
      %s379 = sphi 0, %s365
      %s383 = sphi 0, %s383
      %s385 = sphi 0, %s383
      %s386 = sphi 0, %s385
      %s400 = sphi 0, %s386
      %s404 = sphi 0, %s404
      %s406 = sphi 0, %s404
      %s407 = sphi 0, %s406
      %s421 = sphi 0, %s407
      %s425 = sphi 0, %s425
      %s427 = sphi 0, %s425
      %s428 = sphi 0, %s427
      %s442 = sphi 0, %s428
      %s446 = sphi 0, %s446
      %s448 = sphi 0, %s446
      %s449 = sphi 0, %s448
      %s463 = sphi 0, %s449
      %s469 = sphi 0, %s471
      %s472 = sphi 0, %s469
      %s473 = sphi 0, %s472
      %s489 = sphi 0, %s473
    $region4: #{tpu_custom_call.1} parent=1 // loop_header_branch
      %43 = sbr.rel (%p41) target = $region8
    $region5: #{tpu_custom_call.1} parent=1 // loop_body
      %s45 = ssub.s32 %s40, 1
      %s46 = ssub.s32 %s40, 2
      %s47 = sadd.s32 %s40, 1
      %s48 = ssub.s32 %s40, %s47
      %p49 = scmp.eq.s32.totalorder %s48, 0
      %s51 = sadd.s32 %s50, 1
      %s52 = scalar_select %p49, %s50, %s51
      %p55 = pneg %p49
      %p56 = scmp.eq.s32.totalorder %s40, 1
      %p57 = por %p55, %p56
      %p58 = scmp.ne.s32.totalorder %s50, %s53
      %p59 = scmp.eq.s32.totalorder %s40, 0
      %p60 = por %p58, %p59
      %p61 = scmp.ne.s32.totalorder %s50, %s53
      %p62 = scmp.eq.s32.totalorder %s45, 1
      %p63 = por %p61, %p62
      %p64 = scmp.ne.s32.totalorder %s53, %s54
      %p65 = scmp.eq.s32.totalorder %s45, 0
      %p66 = por %p64, %p65
      %p67 = scmp.ne.s32.totalorder %s53, %s54
      %p68 = scmp.eq.s32.totalorder %s46, 1
      %p69 = por %p67, %p68
      %p71 = scmp.ne.s32.totalorder %s54, %s70
      %p72 = scmp.eq.s32.totalorder %s46, 0
      %p73 = por %p71, %p72
      %s74 = ssub.s32 %s40, %s47
      %p75 = scmp.eq.s32.totalorder %s74, 0
      %s77 = sadd.s32 %s76, 1
      %s78 = scalar_select %p75, %s76, %s77
      %p81 = pneg %p75
      %p82 = scmp.eq.s32.totalorder %s40, 1
      %p83 = por %p81, %p82
      %p84 = scmp.ne.s32.totalorder %s76, %s79
      %p85 = scmp.eq.s32.totalorder %s40, 0
      %p86 = por %p84, %p85
      %p87 = scmp.ne.s32.totalorder %s76, %s79
      %p88 = scmp.eq.s32.totalorder %s45, 1
      %p89 = por %p87, %p88
      %p90 = scmp.ne.s32.totalorder %s79, %s80
      %p91 = scmp.eq.s32.totalorder %s45, 0
      %p92 = por %p90, %p91
      %p93 = scmp.ne.s32.totalorder %s79, %s80
      %p94 = scmp.eq.s32.totalorder %s46, 1
      %p95 = por %p93, %p94
      %p97 = scmp.ne.s32.totalorder %s80, %s96
      %p98 = scmp.eq.s32.totalorder %s46, 0
      %p99 = por %p97, %p98
      %s100 = ssub.s32 %s40, %s47
      %p101 = scmp.eq.s32.totalorder %s100, 0
      %s103 = sadd.s32 %s102, 1
      %s104 = scalar_select %p101, %s102, %s103
      %p107 = pneg %p101
      %p108 = scmp.eq.s32.totalorder %s40, 1
      %p109 = por %p107, %p108
      %p110 = scmp.ne.s32.totalorder %s102, %s105
      %p111 = scmp.eq.s32.totalorder %s40, 0
      %p112 = por %p110, %p111
      %p113 = scmp.ne.s32.totalorder %s102, %s105
      %p114 = scmp.eq.s32.totalorder %s45, 1
      %p115 = por %p113, %p114
      %p116 = scmp.ne.s32.totalorder %s105, %s106
      %p117 = scmp.eq.s32.totalorder %s45, 0
      %p118 = por %p116, %p117
      %p119 = scmp.ne.s32.totalorder %s105, %s106
      %p120 = scmp.eq.s32.totalorder %s46, 1
      %p121 = por %p119, %p120
      %p123 = scmp.ne.s32.totalorder %s106, %s122
      %p124 = scmp.eq.s32.totalorder %s46, 0
      %p125 = por %p123, %p124
      %s126 = ssub.s32 %s40, %s47
      %p127 = scmp.eq.s32.totalorder %s126, 0
      %s129 = sadd.s32 %s128, 1
      %s130 = scalar_select %p127, %s128, %s129
      %p133 = pneg %p127
      %p134 = scmp.eq.s32.totalorder %s40, 1
      %p135 = por %p133, %p134
      %p136 = scmp.ne.s32.totalorder %s128, %s131
      %p137 = scmp.eq.s32.totalorder %s40, 0
      %p138 = por %p136, %p137
      %p139 = scmp.ne.s32.totalorder %s128, %s131
      %p140 = scmp.eq.s32.totalorder %s45, 1
      %p141 = por %p139, %p140
      %p142 = scmp.ne.s32.totalorder %s131, %s132
      %p143 = scmp.eq.s32.totalorder %s45, 0
      %p144 = por %p142, %p143
      %p145 = scmp.ne.s32.totalorder %s131, %s132
      %p146 = scmp.eq.s32.totalorder %s46, 1
      %p147 = por %p145, %p146
      %p149 = scmp.ne.s32.totalorder %s132, %s148
      %p150 = scmp.eq.s32.totalorder %s46, 0
      %p151 = por %p149, %p150
      %s153 = sadd.s32 %s152, 1
      %p156 = scmp.eq.s32.totalorder %s40, 1
      %p157 = scmp.ne.s32.totalorder %s152, %s154
      %p158 = scmp.eq.s32.totalorder %s40, 0
      %p159 = por %p157, %p158
      %p160 = scmp.ne.s32.totalorder %s152, %s154
      %p161 = scmp.eq.s32.totalorder %s45, 1
      %p162 = por %p160, %p161
      %p163 = scmp.ne.s32.totalorder %s154, %s155
      %p164 = scmp.eq.s32.totalorder %s45, 0
      %p165 = por %p163, %p164
      %p166 = scmp.ne.s32.totalorder %s154, %s155
      %p167 = scmp.eq.s32.totalorder %s46, 1
      %p168 = por %p166, %p167
      %p170 = scmp.ne.s32.totalorder %s155, %s169
      %p171 = scmp.eq.s32.totalorder %s46, 0
      %p172 = por %p170, %p171
      %s174 = sadd.s32 %s173, 1
      %p177 = scmp.eq.s32.totalorder %s40, 1
      %p178 = scmp.ne.s32.totalorder %s173, %s175
      %p179 = scmp.eq.s32.totalorder %s40, 0
      %p180 = por %p178, %p179
      %p181 = scmp.ne.s32.totalorder %s173, %s175
      %p182 = scmp.eq.s32.totalorder %s45, 1
      %p183 = por %p181, %p182
      %p184 = scmp.ne.s32.totalorder %s175, %s176
      %p185 = scmp.eq.s32.totalorder %s45, 0
      %p186 = por %p184, %p185
      %p187 = scmp.ne.s32.totalorder %s175, %s176
      %p188 = scmp.eq.s32.totalorder %s46, 1
      %p189 = por %p187, %p188
      %p191 = scmp.ne.s32.totalorder %s176, %s190
      %p192 = scmp.eq.s32.totalorder %s46, 0
      %p193 = por %p191, %p192
      %s195 = sadd.s32 %s194, 1
      %p198 = scmp.eq.s32.totalorder %s40, 1
      %p199 = scmp.ne.s32.totalorder %s194, %s196
      %p200 = scmp.eq.s32.totalorder %s40, 0
      %p201 = por %p199, %p200
      %p202 = scmp.ne.s32.totalorder %s194, %s196
      %p203 = scmp.eq.s32.totalorder %s45, 1
      %p204 = por %p202, %p203
      %p205 = scmp.ne.s32.totalorder %s196, %s197
      %p206 = scmp.eq.s32.totalorder %s45, 0
      %p207 = por %p205, %p206
      %p208 = scmp.ne.s32.totalorder %s196, %s197
      %p209 = scmp.eq.s32.totalorder %s46, 1
      %p210 = por %p208, %p209
      %p212 = scmp.ne.s32.totalorder %s197, %s211
      %p213 = scmp.eq.s32.totalorder %s46, 0
      %p214 = por %p212, %p213
      %s216 = sadd.s32 %s215, 1
      %p219 = scmp.eq.s32.totalorder %s40, 1
      %p220 = scmp.ne.s32.totalorder %s215, %s217
      %p221 = scmp.eq.s32.totalorder %s40, 0
      %p222 = por %p220, %p221
      %p223 = scmp.ne.s32.totalorder %s215, %s217
      %p224 = scmp.eq.s32.totalorder %s45, 1
      %p225 = por %p223, %p224
      %p226 = scmp.ne.s32.totalorder %s217, %s218
      %p227 = scmp.eq.s32.totalorder %s45, 0
      %p228 = por %p226, %p227
      %p229 = scmp.ne.s32.totalorder %s217, %s218
      %p230 = scmp.eq.s32.totalorder %s46, 1
      %p231 = por %p229, %p230
      %p233 = scmp.ne.s32.totalorder %s218, %s232
      %p234 = scmp.eq.s32.totalorder %s46, 0
      %p235 = por %p233, %p234
      %s237 = sadd.s32 %s236, 1
      %p240 = scmp.eq.s32.totalorder %s40, 1
      %p241 = scmp.ne.s32.totalorder %s236, %s238
      %p242 = scmp.eq.s32.totalorder %s40, 0
      %p243 = por %p241, %p242
      %p244 = scmp.ne.s32.totalorder %s236, %s238
      %p245 = scmp.eq.s32.totalorder %s45, 1
      %p246 = por %p244, %p245
      %p247 = scmp.ne.s32.totalorder %s238, %s239
      %p248 = scmp.eq.s32.totalorder %s45, 0
      %p249 = por %p247, %p248
      %p250 = scmp.ne.s32.totalorder %s238, %s239
      %p251 = scmp.eq.s32.totalorder %s46, 1
      %p252 = por %p250, %p251
      %p254 = scmp.ne.s32.totalorder %s239, %s253
      %p255 = scmp.eq.s32.totalorder %s46, 0
      %p256 = por %p254, %p255
      %s258 = sadd.s32 %s257, 1
      %p261 = scmp.eq.s32.totalorder %s40, 1
      %p262 = scmp.ne.s32.totalorder %s257, %s259
      %p263 = scmp.eq.s32.totalorder %s40, 0
      %p264 = por %p262, %p263
      %p265 = scmp.ne.s32.totalorder %s257, %s259
      %p266 = scmp.eq.s32.totalorder %s45, 1
      %p267 = por %p265, %p266
      %p268 = scmp.ne.s32.totalorder %s259, %s260
      %p269 = scmp.eq.s32.totalorder %s45, 0
      %p270 = por %p268, %p269
      %p271 = scmp.ne.s32.totalorder %s259, %s260
      %p272 = scmp.eq.s32.totalorder %s46, 1
      %p273 = por %p271, %p272
      %p275 = scmp.ne.s32.totalorder %s260, %s274
      %p276 = scmp.eq.s32.totalorder %s46, 0
      %p277 = por %p275, %p276
      %s279 = sadd.s32 %s278, 1
      %p282 = scmp.eq.s32.totalorder %s40, 1
      %p283 = scmp.ne.s32.totalorder %s278, %s280
      %p284 = scmp.eq.s32.totalorder %s40, 0
      %p285 = por %p283, %p284
      %p286 = scmp.ne.s32.totalorder %s278, %s280
      %p287 = scmp.eq.s32.totalorder %s45, 1
      %p288 = por %p286, %p287
      %p289 = scmp.ne.s32.totalorder %s280, %s281
      %p290 = scmp.eq.s32.totalorder %s45, 0
      %p291 = por %p289, %p290
      %p292 = scmp.ne.s32.totalorder %s280, %s281
      %p293 = scmp.eq.s32.totalorder %s46, 1
      %p294 = por %p292, %p293
      %p296 = scmp.ne.s32.totalorder %s281, %s295
      %p297 = scmp.eq.s32.totalorder %s46, 0
      %p298 = por %p296, %p297
      %s300 = sadd.s32 %s299, 1
      %p303 = scmp.eq.s32.totalorder %s40, 1
      %p304 = scmp.ne.s32.totalorder %s299, %s301
      %p305 = scmp.eq.s32.totalorder %s40, 0
      %p306 = por %p304, %p305
      %p307 = scmp.ne.s32.totalorder %s299, %s301
      %p308 = scmp.eq.s32.totalorder %s45, 1
      %p309 = por %p307, %p308
      %p310 = scmp.ne.s32.totalorder %s301, %s302
      %p311 = scmp.eq.s32.totalorder %s45, 0
      %p312 = por %p310, %p311
      %p313 = scmp.ne.s32.totalorder %s301, %s302
      %p314 = scmp.eq.s32.totalorder %s46, 1
      %p315 = por %p313, %p314
      %p317 = scmp.ne.s32.totalorder %s302, %s316
      %p318 = scmp.eq.s32.totalorder %s46, 0
      %p319 = por %p317, %p318
      %s321 = sadd.s32 %s320, 1
      %p324 = scmp.eq.s32.totalorder %s40, 1
      %p325 = scmp.ne.s32.totalorder %s320, %s322
      %p326 = scmp.eq.s32.totalorder %s40, 0
      %p327 = por %p325, %p326
      %p328 = scmp.ne.s32.totalorder %s320, %s322
      %p329 = scmp.eq.s32.totalorder %s45, 1
      %p330 = por %p328, %p329
      %p331 = scmp.ne.s32.totalorder %s322, %s323
      %p332 = scmp.eq.s32.totalorder %s45, 0
      %p333 = por %p331, %p332
      %p334 = scmp.ne.s32.totalorder %s322, %s323
      %p335 = scmp.eq.s32.totalorder %s46, 1
      %p336 = por %p334, %p335
      %p338 = scmp.ne.s32.totalorder %s323, %s337
      %p339 = scmp.eq.s32.totalorder %s46, 0
      %p340 = por %p338, %p339
      %s342 = sadd.s32 %s341, 1
      %p345 = scmp.eq.s32.totalorder %s40, 1
      %p346 = scmp.ne.s32.totalorder %s341, %s343
      %p347 = scmp.eq.s32.totalorder %s40, 0
      %p348 = por %p346, %p347
      %p349 = scmp.ne.s32.totalorder %s341, %s343
      %p350 = scmp.eq.s32.totalorder %s45, 1
      %p351 = por %p349, %p350
      %p352 = scmp.ne.s32.totalorder %s343, %s344
      %p353 = scmp.eq.s32.totalorder %s45, 0
      %p354 = por %p352, %p353
      %p355 = scmp.ne.s32.totalorder %s343, %s344
      %p356 = scmp.eq.s32.totalorder %s46, 1
      %p357 = por %p355, %p356
      %p359 = scmp.ne.s32.totalorder %s344, %s358
      %p360 = scmp.eq.s32.totalorder %s46, 0
      %p361 = por %p359, %p360
      %s363 = sadd.s32 %s362, 1
      %p366 = scmp.eq.s32.totalorder %s40, 1
      %p367 = scmp.ne.s32.totalorder %s362, %s364
      %p368 = scmp.eq.s32.totalorder %s40, 0
      %p369 = por %p367, %p368
      %p370 = scmp.ne.s32.totalorder %s362, %s364
      %p371 = scmp.eq.s32.totalorder %s45, 1
      %p372 = por %p370, %p371
      %p373 = scmp.ne.s32.totalorder %s364, %s365
      %p374 = scmp.eq.s32.totalorder %s45, 0
      %p375 = por %p373, %p374
      %p376 = scmp.ne.s32.totalorder %s364, %s365
      %p377 = scmp.eq.s32.totalorder %s46, 1
      %p378 = por %p376, %p377
      %p380 = scmp.ne.s32.totalorder %s365, %s379
      %p381 = scmp.eq.s32.totalorder %s46, 0
      %p382 = por %p380, %p381
      %s384 = sadd.s32 %s383, 1
      %p387 = scmp.eq.s32.totalorder %s40, 1
      %p388 = scmp.ne.s32.totalorder %s383, %s385
      %p389 = scmp.eq.s32.totalorder %s40, 0
      %p390 = por %p388, %p389
      %p391 = scmp.ne.s32.totalorder %s383, %s385
      %p392 = scmp.eq.s32.totalorder %s45, 1
      %p393 = por %p391, %p392
      %p394 = scmp.ne.s32.totalorder %s385, %s386
      %p395 = scmp.eq.s32.totalorder %s45, 0
      %p396 = por %p394, %p395
      %p397 = scmp.ne.s32.totalorder %s385, %s386
      %p398 = scmp.eq.s32.totalorder %s46, 1
      %p399 = por %p397, %p398
      %p401 = scmp.ne.s32.totalorder %s386, %s400
      %p402 = scmp.eq.s32.totalorder %s46, 0
      %p403 = por %p401, %p402
      %s405 = sadd.s32 %s404, 1
      %p408 = scmp.eq.s32.totalorder %s40, 1
      %p409 = scmp.ne.s32.totalorder %s404, %s406
      %p410 = scmp.eq.s32.totalorder %s40, 0
      %p411 = por %p409, %p410
      %p412 = scmp.ne.s32.totalorder %s404, %s406
      %p413 = scmp.eq.s32.totalorder %s45, 1
      %p414 = por %p412, %p413
      %p415 = scmp.ne.s32.totalorder %s406, %s407
      %p416 = scmp.eq.s32.totalorder %s45, 0
      %p417 = por %p415, %p416
      %p418 = scmp.ne.s32.totalorder %s406, %s407
      %p419 = scmp.eq.s32.totalorder %s46, 1
      %p420 = por %p418, %p419
      %p422 = scmp.ne.s32.totalorder %s407, %s421
      %p423 = scmp.eq.s32.totalorder %s46, 0
      %p424 = por %p422, %p423
      %s426 = sadd.s32 %s425, 1
      %p429 = scmp.eq.s32.totalorder %s40, 1
      %p430 = scmp.ne.s32.totalorder %s425, %s427
      %p431 = scmp.eq.s32.totalorder %s40, 0
      %p432 = por %p430, %p431
      %p433 = scmp.ne.s32.totalorder %s425, %s427
      %p434 = scmp.eq.s32.totalorder %s45, 1
      %p435 = por %p433, %p434
      %p436 = scmp.ne.s32.totalorder %s427, %s428
      %p437 = scmp.eq.s32.totalorder %s45, 0
      %p438 = por %p436, %p437
      %p439 = scmp.ne.s32.totalorder %s427, %s428
      %p440 = scmp.eq.s32.totalorder %s46, 1
      %p441 = por %p439, %p440
      %p443 = scmp.ne.s32.totalorder %s428, %s442
      %p444 = scmp.eq.s32.totalorder %s46, 0
      %p445 = por %p443, %p444
      %s447 = sadd.s32 %s446, 1
      %p450 = scmp.eq.s32.totalorder %s40, 1
      %p451 = scmp.ne.s32.totalorder %s446, %s448
      %p452 = scmp.eq.s32.totalorder %s40, 0
      %p453 = por %p451, %p452
      %p454 = scmp.ne.s32.totalorder %s446, %s448
      %p455 = scmp.eq.s32.totalorder %s45, 1
      %p456 = por %p454, %p455
      %p457 = scmp.ne.s32.totalorder %s448, %s449
      %p458 = scmp.eq.s32.totalorder %s45, 0
      %p459 = por %p457, %p458
      %p460 = scmp.ne.s32.totalorder %s448, %s449
      %p461 = scmp.eq.s32.totalorder %s46, 1
      %p462 = por %p460, %p461
      %p464 = scmp.ne.s32.totalorder %s449, %s463
      %p465 = scmp.eq.s32.totalorder %s46, 0
      %p466 = por %p464, %p465
      %s467 = ssub.s32 %s40, %s47
      %p468 = scmp.eq.s32.totalorder %s467, 0
      %s470 = sadd.s32 %s469, 1
      %s471 = scalar_select %p468, %s469, %s470
      %p474 = pneg %p468
      %p475 = scmp.eq.s32.totalorder %s40, 1
      %p476 = por %p474, %p475
      %p477 = scmp.ne.s32.totalorder %s469, %s472
      %p478 = scmp.eq.s32.totalorder %s40, 0
      %p479 = por %p477, %p478
      %p480 = scmp.ne.s32.totalorder %s469, %s472
      %p481 = scmp.eq.s32.totalorder %s45, 1
      %p482 = por %p480, %p481
      %p483 = scmp.ne.s32.totalorder %s472, %s473
      %p484 = scmp.eq.s32.totalorder %s45, 0
      %p485 = por %p483, %p484
      %p486 = scmp.ne.s32.totalorder %s472, %s473
      %p487 = scmp.eq.s32.totalorder %s46, 1
      %p488 = por %p486, %p487
      %p490 = scmp.ne.s32.totalorder %s473, %s489
      %p491 = scmp.eq.s32.totalorder %s46, 0
      %p492 = por %p490, %p491
      %p493 = scmp.le.s32.totalorder 1, %s40
      %p494 = scmp.lt.s32.totalorder %s40, 3
      %p495 = pnand %p493, %p494
      %p496 = pneg %p495
      // Predicated region
      $region9: #{tpu_custom_call.1} parent=5 // pred_check
        _
      $region10: #{tpu_custom_call.1} parent=5 // pred_check_branch
        %498 = sbr.rel (%p495) target = $region12
      $region11: #{tpu_custom_call.1} parent=5 // pred_region
        %s499 = ssub.s32 %s40, 1
        // Predicated region
        $region13: #{tpu_custom_call.1} parent=11 // pred_check
          %p500 = pneg %p165
        $region14: #{tpu_custom_call.1} parent=11 // pred_check_branch
          %502 = sbr.rel (%p500) target = $region16
        $region15: #{tpu_custom_call.1} parent=11 // pred_region
          %504 = vsyncadd [#allocation6], 0
          %s506 = sshll.u32 %s4, 4
          %s507 = int_to_ptr.hbm [resolvable:$true] %s506
          %s508 = sshll.u32 [#allocation7], 4
          %s509 = int_to_ptr.vmem [resolvable:$true] %s508
          %511 = dma.hbm_to_vmem [thread:$0]  %s507, 128, %s509, [#allocation6]
        $region16: #{tpu_custom_call.1} parent=11 // pred_fallthru
          _
        // Predicated region
        $region17: #{tpu_custom_call.1} parent=11 // pred_check
          %p512 = pneg %p186
        $region18: #{tpu_custom_call.1} parent=11 // pred_check_branch
          %514 = sbr.rel (%p512) target = $region20
        $region19: #{tpu_custom_call.1} parent=11 // pred_region
          _
        $region20: #{tpu_custom_call.1} parent=11 // pred_fallthru
          _
        // Predicated region
        $region21: #{tpu_custom_call.1} parent=11 // pred_check
          %p515 = pneg %p207
        $region22: #{tpu_custom_call.1} parent=11 // pred_check_branch
          %517 = sbr.rel (%p515) target = $region24
        $region23: #{tpu_custom_call.1} parent=11 // pred_region
          %519 = vsyncadd [#allocation9], 0
          %s521 = sshll.u32 %s6, 4
          %s522 = int_to_ptr.hbm [resolvable:$true] %s521
          %s523 = sshll.u32 [#allocation8], 4
          %s524 = int_to_ptr.vmem [resolvable:$true] %s523
          %526 = dma.hbm_to_vmem [thread:$0]  %s522, 16, %s524, [#allocation9]
        $region24: #{tpu_custom_call.1} parent=11 // pred_fallthru
          _
        // Predicated region
        $region25: #{tpu_custom_call.1} parent=11 // pred_check
          %p527 = pneg %p228
        $region26: #{tpu_custom_call.1} parent=11 // pred_check_branch
          %529 = sbr.rel (%p527) target = $region28
        $region27: #{tpu_custom_call.1} parent=11 // pred_region
          %531 = vsyncadd [#allocation9], 0
          %s532 = sshll.u32 %s7, 4
          %s533 = int_to_ptr.hbm [resolvable:$true] %s532
          %s534 = sshll.u32 [#allocation10], 4
          %s535 = int_to_ptr.vmem [resolvable:$true] %s534
          %540 = dma.hbm_to_vmem [thread:$0]  %s533, 256, %s535, [#allocation9], 64, 64, 4
        $region28: #{tpu_custom_call.1} parent=11 // pred_fallthru
          _
        // Predicated region
        $region29: #{tpu_custom_call.1} parent=11 // pred_check
          %p541 = pneg %p249
        $region30: #{tpu_custom_call.1} parent=11 // pred_check_branch
          %543 = sbr.rel (%p541) target = $region32
        $region31: #{tpu_custom_call.1} parent=11 // pred_region
          %545 = vsyncadd [#allocation12], 0
          %s547 = sshll.u32 %s8, 4
          %s548 = int_to_ptr.hbm [resolvable:$true] %s547
          %s549 = sshll.u32 [#allocation11], 4
          %s550 = int_to_ptr.vmem [resolvable:$true] %s549
          %552 = dma.hbm_to_vmem [thread:$0]  %s548, 16, %s550, [#allocation12]
        $region32: #{tpu_custom_call.1} parent=11 // pred_fallthru
          _
        // Predicated region
        $region33: #{tpu_custom_call.1} parent=11 // pred_check
          %p553 = pneg %p270
        $region34: #{tpu_custom_call.1} parent=11 // pred_check_branch
          %555 = sbr.rel (%p553) target = $region36
        $region35: #{tpu_custom_call.1} parent=11 // pred_region
          %557 = vsyncadd [#allocation12], 0
          %s558 = sshll.u32 %s9, 4
          %s559 = int_to_ptr.hbm [resolvable:$true] %s558
          %s560 = sshll.u32 [#allocation13], 4
          %s561 = int_to_ptr.vmem [resolvable:$true] %s560
          %566 = dma.hbm_to_vmem [thread:$0]  %s559, 256, %s561, [#allocation12], 64, 64, 4
        $region36: #{tpu_custom_call.1} parent=11 // pred_fallthru
          _
        // Predicated region
        $region37: #{tpu_custom_call.1} parent=11 // pred_check
          %p567 = pneg %p291
        $region38: #{tpu_custom_call.1} parent=11 // pred_check_branch
          %569 = sbr.rel (%p567) target = $region40
        $region39: #{tpu_custom_call.1} parent=11 // pred_region
          %571 = vsyncadd [#allocation15], 0
          %s573 = sshll.u32 %s10, 4
          %s574 = int_to_ptr.hbm [resolvable:$true] %s573
          %s575 = sshll.u32 [#allocation14], 4
          %s576 = int_to_ptr.vmem [resolvable:$true] %s575
          %578 = dma.hbm_to_vmem [thread:$0]  %s574, 16, %s576, [#allocation15]
        $region40: #{tpu_custom_call.1} parent=11 // pred_fallthru
          _
        // Predicated region
        $region41: #{tpu_custom_call.1} parent=11 // pred_check
          %p579 = pneg %p312
        $region42: #{tpu_custom_call.1} parent=11 // pred_check_branch
          %581 = sbr.rel (%p579) target = $region44
        $region43: #{tpu_custom_call.1} parent=11 // pred_region
          %583 = vsyncadd [#allocation15], 0
          %s584 = sshll.u32 %s11, 4
          %s585 = int_to_ptr.hbm [resolvable:$true] %s584
          %s586 = sshll.u32 [#allocation16], 4
          %s587 = int_to_ptr.vmem [resolvable:$true] %s586
          %592 = dma.hbm_to_vmem [thread:$0]  %s585, 256, %s587, [#allocation15], 64, 64, 4
        $region44: #{tpu_custom_call.1} parent=11 // pred_fallthru
          _
        // Predicated region
        $region45: #{tpu_custom_call.1} parent=11 // pred_check
          %p593 = pneg %p333
        $region46: #{tpu_custom_call.1} parent=11 // pred_check_branch
          %595 = sbr.rel (%p593) target = $region48
        $region47: #{tpu_custom_call.1} parent=11 // pred_region
          %597 = vsyncadd [#allocation18], 0
          %s599 = sshll.u32 %s12, 4
          %s600 = int_to_ptr.hbm [resolvable:$true] %s599
          %s601 = sshll.u32 [#allocation17], 4
          %s602 = int_to_ptr.vmem [resolvable:$true] %s601
          %604 = dma.hbm_to_vmem [thread:$0]  %s600, 16, %s602, [#allocation18]
        $region48: #{tpu_custom_call.1} parent=11 // pred_fallthru
          _
        // Predicated region
        $region49: #{tpu_custom_call.1} parent=11 // pred_check
          %p605 = pneg %p354
        $region50: #{tpu_custom_call.1} parent=11 // pred_check_branch
          %607 = sbr.rel (%p605) target = $region52
        $region51: #{tpu_custom_call.1} parent=11 // pred_region
          %609 = vsyncadd [#allocation18], 0
          %s610 = sshll.u32 %s13, 4
          %s611 = int_to_ptr.hbm [resolvable:$true] %s610
          %s612 = sshll.u32 [#allocation19], 4
          %s613 = int_to_ptr.vmem [resolvable:$true] %s612
          %618 = dma.hbm_to_vmem [thread:$0]  %s611, 256, %s613, [#allocation18], 64, 64, 4
        $region52: #{tpu_custom_call.1} parent=11 // pred_fallthru
          _
        // Predicated region
        $region53: #{tpu_custom_call.1} parent=11 // pred_check
          %p619 = pneg %p375
        $region54: #{tpu_custom_call.1} parent=11 // pred_check_branch
          %621 = sbr.rel (%p619) target = $region56
        $region55: #{tpu_custom_call.1} parent=11 // pred_region
          %623 = vsyncadd [#allocation21], 0
          %s625 = sshll.u32 %s14, 4
          %s626 = int_to_ptr.hbm [resolvable:$true] %s625
          %s627 = sshll.u32 [#allocation20], 4
          %s628 = int_to_ptr.vmem [resolvable:$true] %s627
          %630 = dma.hbm_to_vmem [thread:$0]  %s626, 16, %s628, [#allocation21]
        $region56: #{tpu_custom_call.1} parent=11 // pred_fallthru
          _
        // Predicated region
        $region57: #{tpu_custom_call.1} parent=11 // pred_check
          %p631 = pneg %p396
        $region58: #{tpu_custom_call.1} parent=11 // pred_check_branch
          %633 = sbr.rel (%p631) target = $region60
        $region59: #{tpu_custom_call.1} parent=11 // pred_region
          %635 = vsyncadd [#allocation21], 0
          %s636 = sshll.u32 %s15, 4
          %s637 = int_to_ptr.hbm [resolvable:$true] %s636
          %s638 = sshll.u32 [#allocation22], 4
          %s639 = int_to_ptr.vmem [resolvable:$true] %s638
          %644 = dma.hbm_to_vmem [thread:$0]  %s637, 256, %s639, [#allocation21], 64, 64, 4
        $region60: #{tpu_custom_call.1} parent=11 // pred_fallthru
          _
        // Predicated region
        $region61: #{tpu_custom_call.1} parent=11 // pred_check
          %p645 = pneg %p417
        $region62: #{tpu_custom_call.1} parent=11 // pred_check_branch
          %647 = sbr.rel (%p645) target = $region64
        $region63: #{tpu_custom_call.1} parent=11 // pred_region
          %649 = vsyncadd [#allocation24], 0
          %s651 = sshll.u32 %s16, 4
          %s652 = int_to_ptr.hbm [resolvable:$true] %s651
          %s653 = sshll.u32 [#allocation23], 4
          %s654 = int_to_ptr.vmem [resolvable:$true] %s653
          %656 = dma.hbm_to_vmem [thread:$0]  %s652, 16, %s654, [#allocation24]
        $region64: #{tpu_custom_call.1} parent=11 // pred_fallthru
          _
        // Predicated region
        $region65: #{tpu_custom_call.1} parent=11 // pred_check
          %p657 = pneg %p438
        $region66: #{tpu_custom_call.1} parent=11 // pred_check_branch
          %659 = sbr.rel (%p657) target = $region68
        $region67: #{tpu_custom_call.1} parent=11 // pred_region
          _
        $region68: #{tpu_custom_call.1} parent=11 // pred_fallthru
          _
        // Predicated region
        $region69: #{tpu_custom_call.1} parent=11 // pred_check
          %p660 = pneg %p459
        $region70: #{tpu_custom_call.1} parent=11 // pred_check_branch
          %662 = sbr.rel (%p660) target = $region72
        $region71: #{tpu_custom_call.1} parent=11 // pred_region
          _
        $region72: #{tpu_custom_call.1} parent=11 // pred_fallthru
          _
      $region12: #{tpu_custom_call.1} parent=5 // pred_fallthru
        _
      %p663 = scmp.lt.s32.totalorder %s40, 2
      // Predicated region
      $region73: #{tpu_custom_call.1} parent=5 // pred_check
        %p664 = pneg %p663
      $region74: #{tpu_custom_call.1} parent=5 // pred_check_branch
        %666 = sbr.rel (%p664) target = $region76
      $region75: #{tpu_custom_call.1} parent=5 // pred_region
        // Predicated region
        $region77: #{tpu_custom_call.1} parent=75 // pred_check
          %p667 = pneg %p60
        $region78: #{tpu_custom_call.1} parent=75 // pred_check_branch
          %669 = sbr.rel (%p667) target = $region80
        $region79: #{tpu_custom_call.1} parent=75 // pred_region
          %p670 = scmp.lt.s32.totalorder %s40, 1
          %s671 = scalar_select %p670, %s40, 1
          %s672 = smul.addr %s671, 8
          %s673 = scalar_lea.vmem %s0, %s672
        $region80: #{tpu_custom_call.1} parent=75 // pred_fallthru
          _
        // Predicated region
        $region81: #{tpu_custom_call.1} parent=75 // pred_check
          %p674 = pneg %p86
        $region82: #{tpu_custom_call.1} parent=75 // pred_check_branch
          %676 = sbr.rel (%p674) target = $region84
        $region83: #{tpu_custom_call.1} parent=75 // pred_region
          %p677 = scmp.lt.s32.totalorder %s40, 1
          %s678 = scalar_select %p677, %s40, 1
          %s679 = smul.addr %s678, 8
          %s680 = scalar_lea.vmem %s1, %s679
        $region84: #{tpu_custom_call.1} parent=75 // pred_fallthru
          _
        // Predicated region
        $region85: #{tpu_custom_call.1} parent=75 // pred_check
          %p681 = pneg %p112
        $region86: #{tpu_custom_call.1} parent=75 // pred_check_branch
          %683 = sbr.rel (%p681) target = $region88
        $region87: #{tpu_custom_call.1} parent=75 // pred_region
          %s684 = sand.u32 %s102, 1
          %s685 = scalar_lea.sflag [#allocation3], %s684
          %s686 = sand.u32 %s102, 1
          %s687 = scalar_lea.vmem [#allocation2], %s686
          %689 = vsyncadd %s685, 0
          %s690 = scalar_lea.hbm %s2, %s40
          %s692 = sshll.u32 %s690, 4
          %s693 = int_to_ptr.hbm [resolvable:$true] %s692
          %s694 = sshll.u32 %s687, 4
          %s695 = int_to_ptr.vmem [resolvable:$true] %s694
          %697 = dma.hbm_to_vmem [thread:$0]  %s693, 16, %s695, %s685
        $region88: #{tpu_custom_call.1} parent=75 // pred_fallthru
          _
        // Predicated region
        $region89: #{tpu_custom_call.1} parent=75 // pred_check
          %p698 = pneg %p138
        $region90: #{tpu_custom_call.1} parent=75 // pred_check_branch
          %700 = sbr.rel (%p698) target = $region92
        $region91: #{tpu_custom_call.1} parent=75 // pred_region
          %s701 = sand.u32 %s40, 1
          %s702 = scalar_lea.sflag [#allocation6], %s701
          %s703 = sand.u32 %s128, 1
          %s704 = scalar_lea.vmem [#allocation5], %s703
          %706 = vsyncadd %s702, 0
          %s707 = scalar_lea.hbm %s3, %s40
          %s709 = sshll.u32 %s707, 4
          %s710 = int_to_ptr.hbm [resolvable:$true] %s709
          %s711 = sshll.u32 %s704, 4
          %s712 = int_to_ptr.vmem [resolvable:$true] %s711
          %714 = dma.hbm_to_vmem [thread:$0]  %s710, 16, %s712, %s702
        $region92: #{tpu_custom_call.1} parent=75 // pred_fallthru
          _
      $region76: #{tpu_custom_call.1} parent=5 // pred_fallthru
        _
      %p715 = scmp.le.s32.totalorder 1, %s40
      %p716 = scmp.lt.s32.totalorder %s40, 3
      %p717 = pnand %p715, %p716
      %p718 = pneg %p717
      // Predicated region
      $region93: #{tpu_custom_call.1} parent=5 // pred_check
        _
      $region94: #{tpu_custom_call.1} parent=5 // pred_check_branch
        %720 = sbr.rel (%p717) target = $region96
      $region95: #{tpu_custom_call.1} parent=5 // pred_region
        %s721 = ssub.s32 %s40, 1
        %s722 = sand.u32 %s105, 1
        %s723 = scalar_lea.sflag [#allocation3], %s722
        %s724 = sand.u32 %s105, 1
        %s725 = scalar_lea.vmem [#allocation2], %s724
        // Predicated region
        $region97: #{tpu_custom_call.1} parent=95 // pred_check
          %p726 = pneg %p118
        $region98: #{tpu_custom_call.1} parent=95 // pred_check_branch
          %728 = sbr.rel (%p726) target = $region100
        $region99: #{tpu_custom_call.1} parent=95 // pred_region
          %730 = dma.done %s723, 16
        $region100: #{tpu_custom_call.1} parent=95 // pred_fallthru
          _
        %s731 = sand.u32 %s45, 1
        %s732 = scalar_lea.sflag [#allocation6], %s731
        %s733 = sand.u32 %s131, 1
        %s734 = scalar_lea.vmem [#allocation5], %s733
        // Predicated region
        $region101: #{tpu_custom_call.1} parent=95 // pred_check
          %p735 = pneg %p144
        $region102: #{tpu_custom_call.1} parent=95 // pred_check_branch
          %737 = sbr.rel (%p735) target = $region104
        $region103: #{tpu_custom_call.1} parent=95 // pred_region
          %739 = dma.done %s732, 16
        $region104: #{tpu_custom_call.1} parent=95 // pred_fallthru
          _
        // Predicated region
        $region105: #{tpu_custom_call.1} parent=95 // pred_check
          %p740 = pneg %p165
        $region106: #{tpu_custom_call.1} parent=95 // pred_check_branch
          %742 = sbr.rel (%p740) target = $region108
        $region107: #{tpu_custom_call.1} parent=95 // pred_region
          %744 = dma.done [#allocation6], 128
        $region108: #{tpu_custom_call.1} parent=95 // pred_fallthru
          _
        // Predicated region
        $region109: #{tpu_custom_call.1} parent=95 // pred_check
          %p745 = pneg %p207
        $region110: #{tpu_custom_call.1} parent=95 // pred_check_branch
          %747 = sbr.rel (%p745) target = $region112
        $region111: #{tpu_custom_call.1} parent=95 // pred_region
          %749 = dma.done [#allocation9], 16
        $region112: #{tpu_custom_call.1} parent=95 // pred_fallthru
          _
        // Predicated region
        $region113: #{tpu_custom_call.1} parent=95 // pred_check
          %p750 = pneg %p228
        $region114: #{tpu_custom_call.1} parent=95 // pred_check_branch
          %752 = sbr.rel (%p750) target = $region116
        $region115: #{tpu_custom_call.1} parent=95 // pred_region
          %754 = dma.done [#allocation9], 256
        $region116: #{tpu_custom_call.1} parent=95 // pred_fallthru
          _
        // Predicated region
        $region117: #{tpu_custom_call.1} parent=95 // pred_check
          %p755 = pneg %p249
        $region118: #{tpu_custom_call.1} parent=95 // pred_check_branch
          %757 = sbr.rel (%p755) target = $region120
        $region119: #{tpu_custom_call.1} parent=95 // pred_region
          %759 = dma.done [#allocation12], 16
        $region120: #{tpu_custom_call.1} parent=95 // pred_fallthru
          _
        // Predicated region
        $region121: #{tpu_custom_call.1} parent=95 // pred_check
          %p760 = pneg %p270
        $region122: #{tpu_custom_call.1} parent=95 // pred_check_branch
          %762 = sbr.rel (%p760) target = $region124
        $region123: #{tpu_custom_call.1} parent=95 // pred_region
          %764 = dma.done [#allocation12], 256
        $region124: #{tpu_custom_call.1} parent=95 // pred_fallthru
          _
        // Predicated region
        $region125: #{tpu_custom_call.1} parent=95 // pred_check
          %p765 = pneg %p291
        $region126: #{tpu_custom_call.1} parent=95 // pred_check_branch
          %767 = sbr.rel (%p765) target = $region128
        $region127: #{tpu_custom_call.1} parent=95 // pred_region
          %769 = dma.done [#allocation15], 16
        $region128: #{tpu_custom_call.1} parent=95 // pred_fallthru
          _
        // Predicated region
        $region129: #{tpu_custom_call.1} parent=95 // pred_check
          %p770 = pneg %p312
        $region130: #{tpu_custom_call.1} parent=95 // pred_check_branch
          %772 = sbr.rel (%p770) target = $region132
        $region131: #{tpu_custom_call.1} parent=95 // pred_region
          %774 = dma.done [#allocation15], 256
        $region132: #{tpu_custom_call.1} parent=95 // pred_fallthru
          _
        // Predicated region
        $region133: #{tpu_custom_call.1} parent=95 // pred_check
          %p775 = pneg %p333
        $region134: #{tpu_custom_call.1} parent=95 // pred_check_branch
          %777 = sbr.rel (%p775) target = $region136
        $region135: #{tpu_custom_call.1} parent=95 // pred_region
          %779 = dma.done [#allocation18], 16
        $region136: #{tpu_custom_call.1} parent=95 // pred_fallthru
          _
        // Predicated region
        $region137: #{tpu_custom_call.1} parent=95 // pred_check
          %p780 = pneg %p354
        $region138: #{tpu_custom_call.1} parent=95 // pred_check_branch
          %782 = sbr.rel (%p780) target = $region140
        $region139: #{tpu_custom_call.1} parent=95 // pred_region
          %784 = dma.done [#allocation18], 256
        $region140: #{tpu_custom_call.1} parent=95 // pred_fallthru
          _
        // Predicated region
        $region141: #{tpu_custom_call.1} parent=95 // pred_check
          %p785 = pneg %p375
        $region142: #{tpu_custom_call.1} parent=95 // pred_check_branch
          %787 = sbr.rel (%p785) target = $region144
        $region143: #{tpu_custom_call.1} parent=95 // pred_region
          %789 = dma.done [#allocation21], 16
        $region144: #{tpu_custom_call.1} parent=95 // pred_fallthru
          _
        // Predicated region
        $region145: #{tpu_custom_call.1} parent=95 // pred_check
          %p790 = pneg %p396
        $region146: #{tpu_custom_call.1} parent=95 // pred_check_branch
          %792 = sbr.rel (%p790) target = $region148
        $region147: #{tpu_custom_call.1} parent=95 // pred_region
          %794 = dma.done [#allocation21], 256
        $region148: #{tpu_custom_call.1} parent=95 // pred_fallthru
          _
        // Predicated region
        $region149: #{tpu_custom_call.1} parent=95 // pred_check
          %p795 = pneg %p417
        $region150: #{tpu_custom_call.1} parent=95 // pred_check_branch
          %797 = sbr.rel (%p795) target = $region152
        $region151: #{tpu_custom_call.1} parent=95 // pred_region
          %799 = dma.done [#allocation24], 16
        $region152: #{tpu_custom_call.1} parent=95 // pred_fallthru
          _
        %p800 = scmp.lt.s32.totalorder %s45, 1
        %s801 = scalar_select %p800, %s45, 1
        %s802 = smul.addr %s801, 8
        %s803 = scalar_lea.vmem %s0, %s802
        %p804 = pneg %p66
        %p805 = pneg %p63
        %p806 = scmp.lt.s32.totalorder %s45, 1
        %s807 = scalar_select %p806, %s45, 1
        %s808 = smul.addr %s807, 8
        %s809 = scalar_lea.vmem %s1, %s808
        %p810 = pneg %p92
        %p811 = pneg %p89
        %s812 = sand.u32 %s105, 1
        %s813 = scalar_lea.sflag [#allocation3], %s812
        %s814 = sand.u32 %s105, 1
        %s815 = scalar_lea.vmem [#allocation2], %s814
        %p816 = pneg %p118
        %p817 = pneg %p115
        %s818 = sand.u32 %s45, 1
        %s819 = scalar_lea.sflag [#allocation6], %s818
        %s820 = sand.u32 %s131, 1
        %s821 = scalar_lea.vmem [#allocation5], %s820
        %p822 = pneg %p144
        %p823 = pneg %p141
        %p824 = pneg %p165
        %p825 = pneg %p162
        %p826 = pneg %p186
        %p827 = pneg %p183
        %p828 = pneg %p207
        %p829 = pneg %p204
        %p830 = pneg %p228
        %p831 = pneg %p225
        %p832 = pneg %p249
        %p833 = pneg %p246
        %p834 = pneg %p270
        %p835 = pneg %p267
        %p836 = pneg %p291
        %p837 = pneg %p288
        %p838 = pneg %p312
        %p839 = pneg %p309
        %p840 = pneg %p333
        %p841 = pneg %p330
        %p842 = pneg %p354
        %p843 = pneg %p351
        %p844 = pneg %p375
        %p845 = pneg %p372
        %p846 = pneg %p396
        %p847 = pneg %p393
        %p848 = pneg %p417
        %p849 = pneg %p414
        %p850 = pneg %p438
        %p851 = pneg %p435
        %p852 = pneg %p459
        %p853 = pneg %p456
        %p854 = pneg %p485
        %p855 = pneg %p482
        %s856 = sand.u32 %s472, 1
        %s857 = scalar_lea.sflag [#allocation4], %s856
        %s858 = sand.u32 %s472, 1
        %s859 = smul.addr %s858, 8
        %s860 = scalar_lea.vmem [#allocation25], %s859
        %p861 = scmp.lt.s32.totalorder %s45, 1
        %s862 = scalar_select %p861, %s45, 1
        %s863 = smul.addr %s862, 8
        %s864 = scalar_lea.vmem %s0, %s863
        %p865 = scmp.lt.s32.totalorder %s45, 1
        %s866 = scalar_select %p865, %s45, 1
        %s867 = smul.addr %s866, 8
        %s868 = scalar_lea.vmem %s1, %s867
        %v870 = vld [vmem:[%s864] sm:$0xff]
        %v871 = vld [vmem:[%s868] sm:$0xff]
        %v872 = vld [vmem:[#allocation7] sm:$0x3f]
        %v873 = vlaneseq
        %v874 = vshrl.u32 %v873, 7
        %v875 = vlaneseq
        %v876 = vand.u32 %v875, 127
        %vm877 = vcmp.gt.s32.totalorder %v876, %v874
        %v878 = vld [vmem:[%s725] sm:$0x1]
        %vm879 = vcmp.gt.f32.partialorder %v878, 0.0
        %v880 = vsel %vm879, 1, 0
        %v881 = vperm.slane %v880, 0
        %vm882 = vcmp.eq.s32.totalorder %v881, 1
        %vm883 = vmor %vm877, %vm882
        %v884 = vsel %vm883, -1e+18, 0.0
        %v885 = vld [vmem:[%s734] sm:$0x1]
        %vm886 = vcmp.gt.f32.partialorder %v885, 0.0
        %v887 = vsel %vm886, -1e+18, 0.0
        %vm888 = vcmask 261120
        %v889 = vsel %vm888, %v870, 0.0
        %890 = vadd.xlane.f32.xlu0 %v889
        %v891 = vpop.xlane.xlu0 %890
        %v892 = vrcp.pop 32.0
        %v893 = vmul.f32 32.0, %v892
        %v894 = vsub.f32 1.0, %v893
        %v895 = vmul.f32 %v892, %v894
        %v896 = vadd.f32 %v892, %v895
        %vm897 = vweird.f32 %v892
        %v898 = vsel %vm897, %v892, %v896
        %v899 = vmul.f32 %v891, %v898
        %v900 = vsub.f32 %v870, %v899
        %v901 = vmul.f32 %v900, %v900
        %v902 = vsel %vm888, %v901, 0.0
        %903 = vadd.xlane.f32.xlu0 %v902
        %v904 = vpop.xlane.xlu0 %903
        %v905 = vmul.f32 %v904, %v898
        %v906 = vadd.f32 %v905, 1e-06
        %v907 = vrsqrt.pop %v906
        %v908 = vmul.f32 %v907, %v906
        %v909 = vmul.f32 %v908, %v907
        %v910 = vmul.f32 0.5, %v909
        %v911 = vsub.f32 1.5, %v910
        %v912 = vmul.f32 %v907, %v911
        %vm913 = vweird.f32 %v906
        %vm914 = vweird.f32 %v907
        %vm915 = vmor %vm913, %vm914
        %v916 = vsel %vm915, %v907, %v912
        %v917 = vmul.f32 %v900, %v916
        %v918 = vperm.slane %v872, 0
        %v919 = vmul.f32 %v917, %v918
        %v920 = vperm.slane %v872, 1
        %v921 = vadd.f32 %v919, %v920
        %v922 = vpack.c.bf16 %v921, %v921
        %v923 = vld [vmem:[%s5] sm:$0xf]
        %v924 = vld [vmem:[%s5 + $0x4] sm:$0xf]
        %v925 = vld [vmem:[%s5 + $0x8] sm:$0xf]
        %v926 = vld [vmem:[%s5 + $0xc] sm:$0xf]
        %v927 = vld [vmem:[#allocation8] sm:$0x1]
        %v929 = vperm.slane %v927, 0
        %v935 = vunpack.c.l.b16 %v923
        %v936 = vunpack.c.l.b16 %v924
        %v937 = vunpack.c.l.b16 %v925
        %v938 = vunpack.c.l.b16 %v926
        %v939 = vpack.c.b16 %v936, %v935
        %v940 = vpack.c.b16 %v938, %v937
        %v944 = vsel %vm888, %v922, 0
        %946 = vmatpush.bf16.msra.mxu0 0
        %947 = vmatpush.bf16.msra.mxu0 0
        %948 = vmatpush.bf16.msra.mxu0 0
        %949 = vmatpush.bf16.msra.mxu0 0
        %950 = vmatpush.bf16.msra.mxu0 0
        %951 = vmatpush.bf16.msra.mxu0 0
        %952 = vmatpush.bf16.msra.mxu0 %v940
        %953 = vmatpush.bf16.msra.mxu0 %v939
        %954 = vmatmul.bf16.gmra.mxu0 %v944
        %v955 = vpop.f32.mrf.mxu0
        %v956 = vadd.f32 %v929, %v955
        %v957 = vpop.f32.mrf.mxu0
        %958 = vdwg.mxu0
        %v959 = vmul.f32 %v956, 0.35355338
        %961 = vrot.lane.b32.xlu0 %v959, 120
        %v962 = vpop.permute.xlu0 %961
        %964 = vrot.lane.b32.xlu0 %v959, 112
        %v965 = vpop.permute.xlu0 %964
        %967 = vrot.lane.b32.xlu0 %v959, 104
        %v968 = vpop.permute.xlu0 %967
        %v970 = vpack.c.bf16 %v959, %v959
        %v971 = vpack.c.bf16 %v962, %v962
        %v972 = vpack.c.bf16 %v965, %v965
        %v973 = vpack.c.bf16 %v968, %v968
        %975 = vrot.lane.b32.xlu0 %v956, 120
        %v976 = vpop.permute.xlu0 %975
        %978 = vrot.lane.b32.xlu0 %v956, 112
        %v979 = vpop.permute.xlu0 %978
        %981 = vrot.lane.b32.xlu0 %v956, 104
        %v982 = vpop.permute.xlu0 %981
        %v984 = vpack.c.bf16 %v956, %v956
        %v985 = vpack.c.bf16 %v976, %v976
        %v986 = vpack.c.bf16 %v979, %v979
        %v987 = vpack.c.bf16 %v982, %v982
        %v989 = vunpack.c.l.b16 %v984
        %v990 = vpack.c.b16 %v989, %v989
        %991 = vrot.lane.b32.xlu0 %v990, 96
        %v992 = vpop.permute.xlu0 %991
        %vm993 = vcmask 64512
        %v995 = vsel %vm993, %v970, 0
        %v998 = vsel %vm993, %v992, 0
        %1000 = vmatpush.bf16.xpose.msra.mxu0 0
        %1001 = vmatpush.bf16.xpose.msra.mxu0 0
        %1002 = vmatpush.bf16.xpose.msra.mxu0 0
        %1003 = vmatpush.bf16.xpose.msra.mxu0 0
        %1004 = vmatpush.bf16.xpose.msra.mxu0 0
        %1005 = vmatpush.bf16.xpose.msra.mxu0 0
        %1006 = vmatpush.bf16.xpose.msra.mxu0 0
        %1007 = vmatpush.bf16.xpose.msra.mxu0 %v998
        %1008 = vmatmul.bf16.gmra.mxu0 %v995
        %v1009 = vpop.f32.mrf.mxu0
        %v1010 = vadd.f32 0.0, %v1009
        %v1011 = vpop.f32.mrf.mxu0
        %1012 = vdwg.mxu0
        %v1014 = vunpack.c.l.b16 %v985
        %v1015 = vpack.c.b16 %v1014, %v1014
        %1016 = vrot.lane.b32.xlu0 %v1015, 96
        %v1017 = vpop.permute.xlu0 %1016
        %v1019 = vsel %vm993, %v971, 0
        %v1022 = vsel %vm993, %v1017, 0
        %1024 = vmatpush.bf16.xpose.msra.mxu0 0
        %1025 = vmatpush.bf16.xpose.msra.mxu0 0
        %1026 = vmatpush.bf16.xpose.msra.mxu0 0
        %1027 = vmatpush.bf16.xpose.msra.mxu0 0
        %1028 = vmatpush.bf16.xpose.msra.mxu0 0
        %1029 = vmatpush.bf16.xpose.msra.mxu0 0
        %1030 = vmatpush.bf16.xpose.msra.mxu0 0
        %1031 = vmatpush.bf16.xpose.msra.mxu0 %v1022
        %1032 = vmatmul.bf16.gmra.mxu0 %v1019
        %v1033 = vpop.f32.mrf.mxu0
        %v1034 = vadd.f32 0.0, %v1033
        %v1035 = vpop.f32.mrf.mxu0
        %1036 = vdwg.mxu0
        %v1038 = vunpack.c.l.b16 %v986
        %v1039 = vpack.c.b16 %v1038, %v1038
        %1040 = vrot.lane.b32.xlu0 %v1039, 96
        %v1041 = vpop.permute.xlu0 %1040
        %v1043 = vsel %vm993, %v972, 0
        %v1046 = vsel %vm993, %v1041, 0
        %1048 = vmatpush.bf16.xpose.msra.mxu0 0
        %1049 = vmatpush.bf16.xpose.msra.mxu0 0
        %1050 = vmatpush.bf16.xpose.msra.mxu0 0
        %1051 = vmatpush.bf16.xpose.msra.mxu0 0
        %1052 = vmatpush.bf16.xpose.msra.mxu0 0
        %1053 = vmatpush.bf16.xpose.msra.mxu0 0
        %1054 = vmatpush.bf16.xpose.msra.mxu0 0
        %1055 = vmatpush.bf16.xpose.msra.mxu0 %v1046
        %1056 = vmatmul.bf16.gmra.mxu0 %v1043
        %v1057 = vpop.f32.mrf.mxu0
        %v1058 = vadd.f32 0.0, %v1057
        %v1059 = vpop.f32.mrf.mxu0
        %1060 = vdwg.mxu0
        %v1062 = vunpack.c.l.b16 %v987
        %v1063 = vpack.c.b16 %v1062, %v1062
        %1064 = vrot.lane.b32.xlu0 %v1063, 96
        %v1065 = vpop.permute.xlu0 %1064
        %v1067 = vsel %vm993, %v973, 0
        %v1070 = vsel %vm993, %v1065, 0
        %1072 = vmatpush.bf16.xpose.msra.mxu0 0
        %1073 = vmatpush.bf16.xpose.msra.mxu0 0
        %1074 = vmatpush.bf16.xpose.msra.mxu0 0
        %1075 = vmatpush.bf16.xpose.msra.mxu0 0
        %1076 = vmatpush.bf16.xpose.msra.mxu0 0
        %1077 = vmatpush.bf16.xpose.msra.mxu0 0
        %1078 = vmatpush.bf16.xpose.msra.mxu0 0
        %1079 = vmatpush.bf16.xpose.msra.mxu0 %v1070
        %1080 = vmatmul.bf16.gmra.mxu0 %v1067
        %v1081 = vpop.f32.mrf.mxu0
        %v1082 = vadd.f32 0.0, %v1081
        %v1083 = vpop.f32.mrf.mxu0
        %1084 = vdwg.mxu0
        %v1085 = vadd.f32 %v1010, %v884
        %v1086 = vadd.f32 %v1034, %v884
        %v1087 = vadd.f32 %v1058, %v884
        %v1088 = vadd.f32 %v1082, %v884
        %v1089 = vsel %vm993, %v1085, -inf
        %1090 = vmax.xlane.f32.xlu0 %v1089
        %v1091 = vpop.xlane.xlu0 %1090
        %v1092 = vsel %vm993, %v1086, -inf
        %1093 = vmax.xlane.f32.xlu0 %v1092
        %v1094 = vpop.xlane.xlu0 %1093
        %v1095 = vsel %vm993, %v1087, -inf
        %1096 = vmax.xlane.f32.xlu0 %v1095
        %v1097 = vpop.xlane.xlu0 %1096
        %v1098 = vsel %vm993, %v1088, -inf
        %1099 = vmax.xlane.f32.xlu0 %v1098
        %v1100 = vpop.xlane.xlu0 %1099
        %v1101 = vsub.f32 %v1085, %v1091
        %v1102 = vsub.f32 %v1086, %v1094
        %v1103 = vsub.f32 %v1087, %v1097
        %v1104 = vsub.f32 %v1088, %v1100
        %v1105 = vmul.f32 %v1101, 1.442695
        %v1106 = vpow.pop %v1105
        %v1107 = vmul.f32 %v1102, 1.442695
        %v1108 = vpow.pop %v1107
        %v1109 = vmul.f32 %v1103, 1.442695
        %v1110 = vpow.pop %v1109
        %v1111 = vmul.f32 %v1104, 1.442695
        %v1112 = vpow.pop %v1111
        %v1113 = vsel %vm993, %v1106, 0.0
        %1114 = vadd.xlane.f32.xlu0 %v1113
        %v1115 = vpop.xlane.xlu0 %1114
        %v1116 = vsel %vm993, %v1108, 0.0
        %1117 = vadd.xlane.f32.xlu0 %v1116
        %v1118 = vpop.xlane.xlu0 %1117
        %v1119 = vsel %vm993, %v1110, 0.0
        %1120 = vadd.xlane.f32.xlu0 %v1119
        %v1121 = vpop.xlane.xlu0 %1120
        %v1122 = vsel %vm993, %v1112, 0.0
        %1123 = vadd.xlane.f32.xlu0 %v1122
        %v1124 = vpop.xlane.xlu0 %1123
        %v1125 = vrcp.pop %v1115
        %v1126 = vrcp.pop %v1118
        %v1127 = vrcp.pop %v1121
        %v1128 = vrcp.pop %v1124
        %v1129 = vmul.f32 %v1106, %v1125
        %v1130 = vmul.f32 %v1108, %v1126
        %v1131 = vmul.f32 %v1110, %v1127
        %v1132 = vmul.f32 %v1112, %v1128
        %v1133 = vpack.c.bf16 %v1129, %v1129
        %v1134 = vpack.c.bf16 %v1130, %v1130
        %v1135 = vpack.c.bf16 %v1131, %v1131
        %v1136 = vpack.c.bf16 %v1132, %v1132
        %1137 = vrot.lane.b32.xlu0 %v990, 64
        %v1138 = vpop.permute.xlu0 %1137
        %v1140 = vsel %vm993, %v1133, 0
        %vm1142 = vcmask 1043456
        %v1144 = vsel %vm1142, %v1138, 0
        %1146 = vmatpush.bf16.msra.mxu0 0
        %1147 = vmatpush.bf16.msra.mxu0 0
        %1148 = vmatpush.bf16.msra.mxu0 0
        %1149 = vmatpush.bf16.msra.mxu0 0
        %1150 = vmatpush.bf16.msra.mxu0 0
        %1151 = vmatpush.bf16.msra.mxu0 0
        %1152 = vmatpush.bf16.msra.mxu0 0
        %1153 = vmatpush.bf16.msra.mxu0 %v1144
        %1154 = vmatmul.bf16.gmra.mxu0 %v1140
        %v1155 = vpop.f32.mrf.mxu0
        %v1156 = vadd.f32 0.0, %v1155
        %v1157 = vpop.f32.mrf.mxu0
        %1158 = vdwg.mxu0
        %1159 = vrot.lane.b32.xlu0 %v1015, 64
        %v1160 = vpop.permute.xlu0 %1159
        %v1162 = vsel %vm993, %v1134, 0
        %v1165 = vsel %vm1142, %v1160, 0
        %1167 = vmatpush.bf16.msra.mxu0 0
        %1168 = vmatpush.bf16.msra.mxu0 0
        %1169 = vmatpush.bf16.msra.mxu0 0
        %1170 = vmatpush.bf16.msra.mxu0 0
        %1171 = vmatpush.bf16.msra.mxu0 0
        %1172 = vmatpush.bf16.msra.mxu0 0
        %1173 = vmatpush.bf16.msra.mxu0 0
        %1174 = vmatpush.bf16.msra.mxu0 %v1165
        %1175 = vmatmul.bf16.gmra.mxu0 %v1162
        %v1176 = vpop.f32.mrf.mxu0
        %v1177 = vadd.f32 0.0, %v1176
        %v1178 = vpop.f32.mrf.mxu0
        %1179 = vdwg.mxu0
        %1180 = vrot.lane.b32.xlu0 %v1039, 64
        %v1181 = vpop.permute.xlu0 %1180
        %v1183 = vsel %vm993, %v1135, 0
        %v1186 = vsel %vm1142, %v1181, 0
        %1188 = vmatpush.bf16.msra.mxu0 0
        %1189 = vmatpush.bf16.msra.mxu0 0
        %1190 = vmatpush.bf16.msra.mxu0 0
        %1191 = vmatpush.bf16.msra.mxu0 0
        %1192 = vmatpush.bf16.msra.mxu0 0
        %1193 = vmatpush.bf16.msra.mxu0 0
        %1194 = vmatpush.bf16.msra.mxu0 0
        %1195 = vmatpush.bf16.msra.mxu0 %v1186
        %1196 = vmatmul.bf16.gmra.mxu0 %v1183
        %v1197 = vpop.f32.mrf.mxu0
        %v1198 = vadd.f32 0.0, %v1197
        %v1199 = vpop.f32.mrf.mxu0
        %1200 = vdwg.mxu0
        %1201 = vrot.lane.b32.xlu0 %v1063, 64
        %v1202 = vpop.permute.xlu0 %1201
        %v1204 = vsel %vm993, %v1136, 0
        %v1207 = vsel %vm1142, %v1202, 0
        %1209 = vmatpush.bf16.msra.mxu0 0
        %1210 = vmatpush.bf16.msra.mxu0 0
        %1211 = vmatpush.bf16.msra.mxu0 0
        %1212 = vmatpush.bf16.msra.mxu0 0
        %1213 = vmatpush.bf16.msra.mxu0 0
        %1214 = vmatpush.bf16.msra.mxu0 0
        %1215 = vmatpush.bf16.msra.mxu0 0
        %1216 = vmatpush.bf16.msra.mxu0 %v1207
        %1217 = vmatmul.bf16.gmra.mxu0 %v1204
        %v1218 = vpop.f32.mrf.mxu0
        %v1219 = vadd.f32 0.0, %v1218
        %v1220 = vpop.f32.mrf.mxu0
        %1221 = vdwg.mxu0
        %v1222 = vld [vmem:[#allocation10] sm:$0xf]
        %v1223 = vld [vmem:[#allocation10 + $0x4] sm:$0xf]
        %v1224 = vld [vmem:[#allocation10 + $0x8] sm:$0xf]
        %v1225 = vld [vmem:[#allocation10 + $0xc] sm:$0xf]
        %v1226 = vld [vmem:[#allocation11] sm:$0x1]
        %v1227 = vpack.c.bf16 %v1156, %v1156
        %v1228 = vpack.c.bf16 %v1177, %v1177
        %v1230 = vsel %vm993, %v1228, 0
        %v1233 = vsel %vm1142, %v1223, 0
        %1235 = vmatpush.bf16.msra.mxu0 0
        %1236 = vmatpush.bf16.msra.mxu0 0
        %1237 = vmatpush.bf16.msra.mxu0 0
        %1238 = vmatpush.bf16.msra.mxu0 0
        %1239 = vmatpush.bf16.msra.mxu0 0
        %1240 = vmatpush.bf16.msra.mxu0 0
        %1241 = vmatpush.bf16.msra.mxu0 0
        %1242 = vmatpush.bf16.msra.mxu0 %v1233
        %1243 = vmatmul.bf16.gmra.mxu0 %v1230
        %v1244 = vpop.f32.mrf.mxu0
        %v1245 = vadd.f32 0.0, %v1244
        %v1246 = vpop.f32.mrf.mxu0
        %1247 = vdwg.mxu0
        %v1249 = vsel %vm993, %v1227, 0
        %v1252 = vsel %vm1142, %v1222, 0
        %1254 = vmatpush.bf16.msra.mxu0 0
        %1255 = vmatpush.bf16.msra.mxu0 0
        %1256 = vmatpush.bf16.msra.mxu0 0
        %1257 = vmatpush.bf16.msra.mxu0 0
        %1258 = vmatpush.bf16.msra.mxu0 0
        %1259 = vmatpush.bf16.msra.mxu0 0
        %1260 = vmatpush.bf16.msra.mxu0 0
        %1261 = vmatpush.bf16.msra.mxu0 %v1252
        %1262 = vmatmul.bf16.gmra.mxu0 %v1249
        %v1263 = vpop.f32.mrf.mxu0
        %v1264 = vadd.f32 %v1245, %v1263
        %v1265 = vpop.f32.mrf.mxu0
        %1266 = vdwg.mxu0
        %v1267 = vpack.c.bf16 %v1198, %v1198
        %v1269 = vsel %vm993, %v1267, 0
        %v1272 = vsel %vm1142, %v1224, 0
        %1274 = vmatpush.bf16.msra.mxu0 0
        %1275 = vmatpush.bf16.msra.mxu0 0
        %1276 = vmatpush.bf16.msra.mxu0 0
        %1277 = vmatpush.bf16.msra.mxu0 0
        %1278 = vmatpush.bf16.msra.mxu0 0
        %1279 = vmatpush.bf16.msra.mxu0 0
        %1280 = vmatpush.bf16.msra.mxu0 0
        %1281 = vmatpush.bf16.msra.mxu0 %v1272
        %1282 = vmatmul.bf16.gmra.mxu0 %v1269
        %v1283 = vpop.f32.mrf.mxu0
        %v1284 = vadd.f32 0.0, %v1283
        %v1285 = vpop.f32.mrf.mxu0
        %1286 = vdwg.mxu0
        %v1287 = vadd.f32 %v1264, %v1284
        %v1288 = vpack.c.bf16 %v1219, %v1219
        %v1290 = vsel %vm993, %v1288, 0
        %v1293 = vsel %vm1142, %v1225, 0
        %1295 = vmatpush.bf16.msra.mxu0 0
        %1296 = vmatpush.bf16.msra.mxu0 0
        %1297 = vmatpush.bf16.msra.mxu0 0
        %1298 = vmatpush.bf16.msra.mxu0 0
        %1299 = vmatpush.bf16.msra.mxu0 0
        %1300 = vmatpush.bf16.msra.mxu0 0
        %1301 = vmatpush.bf16.msra.mxu0 0
        %1302 = vmatpush.bf16.msra.mxu0 %v1293
        %1303 = vmatmul.bf16.gmra.mxu0 %v1290
        %v1304 = vpop.f32.mrf.mxu0
        %v1305 = vadd.f32 0.0, %v1304
        %v1306 = vpop.f32.mrf.mxu0
        %1307 = vdwg.mxu0
        %v1308 = vadd.f32 %v1287, %v1305
        %v1310 = vperm.slane %v1226, 0
        %v1312 = vadd.f32 %v1308, %v1310
        %v1313 = vadd.f32 %v1312, %v870
        %v1314 = vsel %vm888, %v1313, 0.0
        %1315 = vadd.xlane.f32.xlu0 %v1314
        %v1316 = vpop.xlane.xlu0 %1315
        %v1317 = vmul.f32 %v1316, %v898
        %v1318 = vsub.f32 %v1313, %v1317
        %v1319 = vmul.f32 %v1318, %v1318
        %v1320 = vsel %vm888, %v1319, 0.0
        %1321 = vadd.xlane.f32.xlu0 %v1320
        %v1322 = vpop.xlane.xlu0 %1321
        %v1323 = vmul.f32 %v1322, %v898
        %v1324 = vadd.f32 %v1323, 1e-06
        %v1325 = vrsqrt.pop %v1324
        %v1326 = vmul.f32 %v1325, %v1324
        %v1327 = vmul.f32 %v1326, %v1325
        %v1328 = vmul.f32 0.5, %v1327
        %v1329 = vsub.f32 1.5, %v1328
        %v1330 = vmul.f32 %v1325, %v1329
        %vm1331 = vweird.f32 %v1324
        %vm1332 = vweird.f32 %v1325
        %vm1333 = vmor %vm1331, %vm1332
        %v1334 = vsel %vm1333, %v1325, %v1330
        %v1335 = vmul.f32 %v1318, %v1334
        %v1336 = vperm.slane %v872, 2
        %v1337 = vmul.f32 %v1335, %v1336
        %v1338 = vperm.slane %v872, 3
        %v1339 = vadd.f32 %v1337, %v1338
        %v1340 = vpack.c.bf16 %v1339, %v1339
        %v1341 = vld [vmem:[#allocation13] sm:$0xf]
        %v1342 = vld [vmem:[#allocation13 + $0x4] sm:$0xf]
        %v1343 = vld [vmem:[#allocation13 + $0x8] sm:$0xf]
        %v1344 = vld [vmem:[#allocation13 + $0xc] sm:$0xf]
        %v1345 = vld [vmem:[#allocation14] sm:$0x1]
        %v1347 = vperm.slane %v1345, 0
        %v1353 = vunpack.c.l.b16 %v1341
        %v1354 = vunpack.c.l.b16 %v1342
        %v1355 = vunpack.c.l.b16 %v1343
        %v1356 = vunpack.c.l.b16 %v1344
        %v1357 = vpack.c.b16 %v1354, %v1353
        %v1358 = vpack.c.b16 %v1356, %v1355
        %v1362 = vsel %vm888, %v1340, 0
        %1364 = vmatpush.bf16.msra.mxu0 0
        %1365 = vmatpush.bf16.msra.mxu0 0
        %1366 = vmatpush.bf16.msra.mxu0 0
        %1367 = vmatpush.bf16.msra.mxu0 0
        %1368 = vmatpush.bf16.msra.mxu0 0
        %1369 = vmatpush.bf16.msra.mxu0 0
        %1370 = vmatpush.bf16.msra.mxu0 %v1358
        %1371 = vmatpush.bf16.msra.mxu0 %v1357
        %1372 = vmatmul.bf16.gmra.mxu0 %v1362
        %v1373 = vpop.f32.mrf.mxu0
        %v1374 = vadd.f32 %v1347, %v1373
        %v1375 = vpop.f32.mrf.mxu0
        %1376 = vdwg.mxu0
        %v1377 = vmul.f32 %v1374, 0.35355338
        %v1378 = vpack.c.bf16 %v871, %v871
        %v1379 = vld [vmem:[#allocation16] sm:$0xf]
        %v1380 = vld [vmem:[#allocation16 + $0x4] sm:$0xf]
        %v1381 = vld [vmem:[#allocation16 + $0x8] sm:$0xf]
        %v1382 = vld [vmem:[#allocation16 + $0xc] sm:$0xf]
        %v1383 = vld [vmem:[#allocation17] sm:$0x1]
        %v1385 = vperm.slane %v1383, 0
        %v1391 = vunpack.c.l.b16 %v1379
        %v1392 = vunpack.c.l.b16 %v1380
        %v1393 = vunpack.c.l.b16 %v1381
        %v1394 = vunpack.c.l.b16 %v1382
        %v1395 = vpack.c.b16 %v1392, %v1391
        %v1396 = vpack.c.b16 %v1394, %v1393
        %v1400 = vsel %vm888, %v1378, 0
        %1402 = vmatpush.bf16.msra.mxu0 0
        %1403 = vmatpush.bf16.msra.mxu0 0
        %1404 = vmatpush.bf16.msra.mxu0 0
        %1405 = vmatpush.bf16.msra.mxu0 0
        %1406 = vmatpush.bf16.msra.mxu0 0
        %1407 = vmatpush.bf16.msra.mxu0 0
        %1408 = vmatpush.bf16.msra.mxu0 %v1396
        %1409 = vmatpush.bf16.msra.mxu0 %v1395
        %1410 = vmatmul.bf16.gmra.mxu0 %v1400
        %v1411 = vpop.f32.mrf.mxu0
        %v1412 = vadd.f32 %v1385, %v1411
        %v1413 = vpop.f32.mrf.mxu0
        %1414 = vdwg.mxu0
        %1416 = vrot.lane.b32.xlu0 %v1377, 120
        %v1417 = vpop.permute.xlu0 %1416
        %1419 = vrot.lane.b32.xlu0 %v1377, 112
        %v1420 = vpop.permute.xlu0 %1419
        %1422 = vrot.lane.b32.xlu0 %v1377, 104
        %v1423 = vpop.permute.xlu0 %1422
        %v1425 = vpack.c.bf16 %v1377, %v1377
        %v1426 = vpack.c.bf16 %v1417, %v1417
        %v1427 = vpack.c.bf16 %v1420, %v1420
        %v1428 = vpack.c.bf16 %v1423, %v1423
        %1430 = vrot.lane.b32.xlu0 %v1412, 120
        %v1431 = vpop.permute.xlu0 %1430
        %1433 = vrot.lane.b32.xlu0 %v1412, 112
        %v1434 = vpop.permute.xlu0 %1433
        %1436 = vrot.lane.b32.xlu0 %v1412, 104
        %v1437 = vpop.permute.xlu0 %1436
        %v1439 = vpack.c.bf16 %v1412, %v1412
        %v1440 = vpack.c.bf16 %v1431, %v1431
        %v1441 = vpack.c.bf16 %v1434, %v1434
        %v1442 = vpack.c.bf16 %v1437, %v1437
        %v1444 = vsel %vm993, %v1425, 0
        %v1447 = vsel %vm993, %v1439, 0
        %1449 = vmatpush.bf16.xpose.msra.mxu0 0
        %1450 = vmatpush.bf16.xpose.msra.mxu0 0
        %1451 = vmatpush.bf16.xpose.msra.mxu0 0
        %1452 = vmatpush.bf16.xpose.msra.mxu0 0
        %1453 = vmatpush.bf16.xpose.msra.mxu0 0
        %1454 = vmatpush.bf16.xpose.msra.mxu0 0
        %1455 = vmatpush.bf16.xpose.msra.mxu0 0
        %1456 = vmatpush.bf16.xpose.msra.mxu0 %v1447
        %1457 = vmatmul.bf16.gmra.mxu0 %v1444
        %v1458 = vpop.f32.mrf.mxu0
        %v1459 = vadd.f32 0.0, %v1458
        %v1460 = vpop.f32.mrf.mxu0
        %1461 = vdwg.mxu0
        %v1463 = vsel %vm993, %v1426, 0
        %v1466 = vsel %vm993, %v1440, 0
        %1468 = vmatpush.bf16.xpose.msra.mxu0 0
        %1469 = vmatpush.bf16.xpose.msra.mxu0 0
        %1470 = vmatpush.bf16.xpose.msra.mxu0 0
        %1471 = vmatpush.bf16.xpose.msra.mxu0 0
        %1472 = vmatpush.bf16.xpose.msra.mxu0 0
        %1473 = vmatpush.bf16.xpose.msra.mxu0 0
        %1474 = vmatpush.bf16.xpose.msra.mxu0 0
        %1475 = vmatpush.bf16.xpose.msra.mxu0 %v1466
        %1476 = vmatmul.bf16.gmra.mxu0 %v1463
        %v1477 = vpop.f32.mrf.mxu0
        %v1478 = vadd.f32 0.0, %v1477
        %v1479 = vpop.f32.mrf.mxu0
        %1480 = vdwg.mxu0
        %v1482 = vsel %vm993, %v1427, 0
        %v1485 = vsel %vm993, %v1441, 0
        %1487 = vmatpush.bf16.xpose.msra.mxu0 0
        %1488 = vmatpush.bf16.xpose.msra.mxu0 0
        %1489 = vmatpush.bf16.xpose.msra.mxu0 0
        %1490 = vmatpush.bf16.xpose.msra.mxu0 0
        %1491 = vmatpush.bf16.xpose.msra.mxu0 0
        %1492 = vmatpush.bf16.xpose.msra.mxu0 0
        %1493 = vmatpush.bf16.xpose.msra.mxu0 0
        %1494 = vmatpush.bf16.xpose.msra.mxu0 %v1485
        %1495 = vmatmul.bf16.gmra.mxu0 %v1482
        %v1496 = vpop.f32.mrf.mxu0
        %v1497 = vadd.f32 0.0, %v1496
        %v1498 = vpop.f32.mrf.mxu0
        %1499 = vdwg.mxu0
        %v1501 = vsel %vm993, %v1428, 0
        %v1504 = vsel %vm993, %v1442, 0
        %1506 = vmatpush.bf16.xpose.msra.mxu0 0
        %1507 = vmatpush.bf16.xpose.msra.mxu0 0
        %1508 = vmatpush.bf16.xpose.msra.mxu0 0
        %1509 = vmatpush.bf16.xpose.msra.mxu0 0
        %1510 = vmatpush.bf16.xpose.msra.mxu0 0
        %1511 = vmatpush.bf16.xpose.msra.mxu0 0
        %1512 = vmatpush.bf16.xpose.msra.mxu0 0
        %1513 = vmatpush.bf16.xpose.msra.mxu0 %v1504
        %1514 = vmatmul.bf16.gmra.mxu0 %v1501
        %v1515 = vpop.f32.mrf.mxu0
        %v1516 = vadd.f32 0.0, %v1515
        %v1517 = vpop.f32.mrf.mxu0
        %1518 = vdwg.mxu0
        %v1520 = vperm.slane %v887, 0
        %v1522 = vadd.f32 %v1459, %v1520
        %v1523 = vadd.f32 %v1478, %v1520
        %v1524 = vadd.f32 %v1497, %v1520
        %v1525 = vadd.f32 %v1516, %v1520
        %v1526 = vsel %vm993, %v1522, -inf
        %1527 = vmax.xlane.f32.xlu0 %v1526
        %v1528 = vpop.xlane.xlu0 %1527
        %v1529 = vsel %vm993, %v1523, -inf
        %1530 = vmax.xlane.f32.xlu0 %v1529
        %v1531 = vpop.xlane.xlu0 %1530
        %v1532 = vsel %vm993, %v1524, -inf
        %1533 = vmax.xlane.f32.xlu0 %v1532
        %v1534 = vpop.xlane.xlu0 %1533
        %v1535 = vsel %vm993, %v1525, -inf
        %1536 = vmax.xlane.f32.xlu0 %v1535
        %v1537 = vpop.xlane.xlu0 %1536
        %v1538 = vsub.f32 %v1522, %v1528
        %v1539 = vsub.f32 %v1523, %v1531
        %v1540 = vsub.f32 %v1524, %v1534
        %v1541 = vsub.f32 %v1525, %v1537
        %v1542 = vmul.f32 %v1538, 1.442695
        %v1543 = vpow.pop %v1542
        %v1544 = vmul.f32 %v1539, 1.442695
        %v1545 = vpow.pop %v1544
        %v1546 = vmul.f32 %v1540, 1.442695
        %v1547 = vpow.pop %v1546
        %v1548 = vmul.f32 %v1541, 1.442695
        %v1549 = vpow.pop %v1548
        %v1550 = vsel %vm993, %v1543, 0.0
        %1551 = vadd.xlane.f32.xlu0 %v1550
        %v1552 = vpop.xlane.xlu0 %1551
        %v1553 = vsel %vm993, %v1545, 0.0
        %1554 = vadd.xlane.f32.xlu0 %v1553
        %v1555 = vpop.xlane.xlu0 %1554
        %v1556 = vsel %vm993, %v1547, 0.0
        %1557 = vadd.xlane.f32.xlu0 %v1556
        %v1558 = vpop.xlane.xlu0 %1557
        %v1559 = vsel %vm993, %v1549, 0.0
        %1560 = vadd.xlane.f32.xlu0 %v1559
        %v1561 = vpop.xlane.xlu0 %1560
        %v1562 = vrcp.pop %v1552
        %v1563 = vrcp.pop %v1555
        %v1564 = vrcp.pop %v1558
        %v1565 = vrcp.pop %v1561
        %v1566 = vmul.f32 %v1543, %v1562
        %v1567 = vmul.f32 %v1545, %v1563
        %v1568 = vmul.f32 %v1547, %v1564
        %v1569 = vmul.f32 %v1549, %v1565
        %v1570 = vrcp.pop %v1552
        %v1571 = vmul.f32 %v1552, %v1570
        %v1572 = vsub.f32 1.0, %v1571
        %v1573 = vmul.f32 %v1570, %v1572
        %v1574 = vadd.f32 %v1570, %v1573
        %vm1575 = vweird.f32 %v1552
        %vm1576 = vweird.f32 %v1570
        %vm1577 = vmor %vm1575, %vm1576
        %v1578 = vsel %vm1577, %v1570, %v1574
        %v1579 = vand.u32 2147483647, %v1552
        %vm1580 = vcmp.eq.f32.partialorder %v1579, 8.507059e+37
        %v1581 = vand.u32 %v1552, 2147483648
        %v1582 = vor.u32 1.1754944e-38, %v1581
        %v1583 = vsel %vm1580, %v1582, %v1578
        %v1584 = vmul.f32 %v1543, %v1583
        %v1585 = vpack.c.bf16 %v1566, %v1566
        %v1586 = vpack.c.bf16 %v1567, %v1567
        %v1587 = vpack.c.bf16 %v1568, %v1568
        %v1588 = vpack.c.bf16 %v1569, %v1569
        %v1590 = vunpack.c.l.b16 %v1439
        %v1591 = vpack.c.b16 %v1590, %v1590
        %1592 = vrot.lane.b32.xlu0 %v1591, 96
        %v1593 = vpop.permute.xlu0 %1592
        %v1595 = vsel %vm993, %v1585, 0
        %v1598 = vsel %vm1142, %v1593, 0
        %1600 = vmatpush.bf16.msra.mxu0 0
        %1601 = vmatpush.bf16.msra.mxu0 0
        %1602 = vmatpush.bf16.msra.mxu0 0
        %1603 = vmatpush.bf16.msra.mxu0 0
        %1604 = vmatpush.bf16.msra.mxu0 0
        %1605 = vmatpush.bf16.msra.mxu0 0
        %1606 = vmatpush.bf16.msra.mxu0 0
        %1607 = vmatpush.bf16.msra.mxu0 %v1598
        %1608 = vmatmul.bf16.gmra.mxu0 %v1595
        %v1609 = vpop.f32.mrf.mxu0
        %v1610 = vadd.f32 0.0, %v1609
        %v1611 = vpop.f32.mrf.mxu0
        %1612 = vdwg.mxu0
        %v1614 = vunpack.c.l.b16 %v1440
        %v1615 = vpack.c.b16 %v1614, %v1614
        %1616 = vrot.lane.b32.xlu0 %v1615, 96
        %v1617 = vpop.permute.xlu0 %1616
        %v1619 = vsel %vm993, %v1586, 0
        %v1622 = vsel %vm1142, %v1617, 0
        %1624 = vmatpush.bf16.msra.mxu0 0
        %1625 = vmatpush.bf16.msra.mxu0 0
        %1626 = vmatpush.bf16.msra.mxu0 0
        %1627 = vmatpush.bf16.msra.mxu0 0
        %1628 = vmatpush.bf16.msra.mxu0 0
        %1629 = vmatpush.bf16.msra.mxu0 0
        %1630 = vmatpush.bf16.msra.mxu0 0
        %1631 = vmatpush.bf16.msra.mxu0 %v1622
        %1632 = vmatmul.bf16.gmra.mxu0 %v1619
        %v1633 = vpop.f32.mrf.mxu0
        %v1634 = vadd.f32 0.0, %v1633
        %v1635 = vpop.f32.mrf.mxu0
        %1636 = vdwg.mxu0
        %v1638 = vunpack.c.l.b16 %v1441
        %v1639 = vpack.c.b16 %v1638, %v1638
        %1640 = vrot.lane.b32.xlu0 %v1639, 96
        %v1641 = vpop.permute.xlu0 %1640
        %v1643 = vsel %vm993, %v1587, 0
        %v1646 = vsel %vm1142, %v1641, 0
        %1648 = vmatpush.bf16.msra.mxu0 0
        %1649 = vmatpush.bf16.msra.mxu0 0
        %1650 = vmatpush.bf16.msra.mxu0 0
        %1651 = vmatpush.bf16.msra.mxu0 0
        %1652 = vmatpush.bf16.msra.mxu0 0
        %1653 = vmatpush.bf16.msra.mxu0 0
        %1654 = vmatpush.bf16.msra.mxu0 0
        %1655 = vmatpush.bf16.msra.mxu0 %v1646
        %1656 = vmatmul.bf16.gmra.mxu0 %v1643
        %v1657 = vpop.f32.mrf.mxu0
        %v1658 = vadd.f32 0.0, %v1657
        %v1659 = vpop.f32.mrf.mxu0
        %1660 = vdwg.mxu0
        %v1662 = vunpack.c.l.b16 %v1442
        %v1663 = vpack.c.b16 %v1662, %v1662
        %1664 = vrot.lane.b32.xlu0 %v1663, 96
        %v1665 = vpop.permute.xlu0 %1664
        %v1667 = vsel %vm993, %v1588, 0
        %v1670 = vsel %vm1142, %v1665, 0
        %1672 = vmatpush.bf16.msra.mxu0 0
        %1673 = vmatpush.bf16.msra.mxu0 0
        %1674 = vmatpush.bf16.msra.mxu0 0
        %1675 = vmatpush.bf16.msra.mxu0 0
        %1676 = vmatpush.bf16.msra.mxu0 0
        %1677 = vmatpush.bf16.msra.mxu0 0
        %1678 = vmatpush.bf16.msra.mxu0 0
        %1679 = vmatpush.bf16.msra.mxu0 %v1670
        %1680 = vmatmul.bf16.gmra.mxu0 %v1667
        %v1681 = vpop.f32.mrf.mxu0
        %v1682 = vadd.f32 0.0, %v1681
        %v1683 = vpop.f32.mrf.mxu0
        %1684 = vdwg.mxu0
        %v1685 = vld [vmem:[#allocation19] sm:$0xf]
        %v1686 = vld [vmem:[#allocation19 + $0x4] sm:$0xf]
        %v1687 = vld [vmem:[#allocation19 + $0x8] sm:$0xf]
        %v1688 = vld [vmem:[#allocation19 + $0xc] sm:$0xf]
        %v1689 = vld [vmem:[#allocation20] sm:$0x1]
        %v1690 = vpack.c.bf16 %v1610, %v1610
        %v1691 = vpack.c.bf16 %v1634, %v1634
        %v1693 = vsel %vm993, %v1691, 0
        %v1696 = vsel %vm1142, %v1686, 0
        %1698 = vmatpush.bf16.msra.mxu0 0
        %1699 = vmatpush.bf16.msra.mxu0 0
        %1700 = vmatpush.bf16.msra.mxu0 0
        %1701 = vmatpush.bf16.msra.mxu0 0
        %1702 = vmatpush.bf16.msra.mxu0 0
        %1703 = vmatpush.bf16.msra.mxu0 0
        %1704 = vmatpush.bf16.msra.mxu0 0
        %1705 = vmatpush.bf16.msra.mxu0 %v1696
        %1706 = vmatmul.bf16.gmra.mxu0 %v1693
        %v1707 = vpop.f32.mrf.mxu0
        %v1708 = vadd.f32 0.0, %v1707
        %v1709 = vpop.f32.mrf.mxu0
        %1710 = vdwg.mxu0
        %v1712 = vsel %vm993, %v1690, 0
        %v1715 = vsel %vm1142, %v1685, 0
        %1717 = vmatpush.bf16.msra.mxu0 0
        %1718 = vmatpush.bf16.msra.mxu0 0
        %1719 = vmatpush.bf16.msra.mxu0 0
        %1720 = vmatpush.bf16.msra.mxu0 0
        %1721 = vmatpush.bf16.msra.mxu0 0
        %1722 = vmatpush.bf16.msra.mxu0 0
        %1723 = vmatpush.bf16.msra.mxu0 0
        %1724 = vmatpush.bf16.msra.mxu0 %v1715
        %1725 = vmatmul.bf16.gmra.mxu0 %v1712
        %v1726 = vpop.f32.mrf.mxu0
        %v1727 = vadd.f32 %v1708, %v1726
        %v1728 = vpop.f32.mrf.mxu0
        %1729 = vdwg.mxu0
        %v1730 = vpack.c.bf16 %v1658, %v1658
        %v1732 = vsel %vm993, %v1730, 0
        %v1735 = vsel %vm1142, %v1687, 0
        %1737 = vmatpush.bf16.msra.mxu0 0
        %1738 = vmatpush.bf16.msra.mxu0 0
        %1739 = vmatpush.bf16.msra.mxu0 0
        %1740 = vmatpush.bf16.msra.mxu0 0
        %1741 = vmatpush.bf16.msra.mxu0 0
        %1742 = vmatpush.bf16.msra.mxu0 0
        %1743 = vmatpush.bf16.msra.mxu0 0
        %1744 = vmatpush.bf16.msra.mxu0 %v1735
        %1745 = vmatmul.bf16.gmra.mxu0 %v1732
        %v1746 = vpop.f32.mrf.mxu0
        %v1747 = vadd.f32 0.0, %v1746
        %v1748 = vpop.f32.mrf.mxu0
        %1749 = vdwg.mxu0
        %v1750 = vadd.f32 %v1727, %v1747
        %v1751 = vpack.c.bf16 %v1682, %v1682
        %v1753 = vsel %vm993, %v1751, 0
        %v1756 = vsel %vm1142, %v1688, 0
        %1758 = vmatpush.bf16.msra.mxu0 0
        %1759 = vmatpush.bf16.msra.mxu0 0
        %1760 = vmatpush.bf16.msra.mxu0 0
        %1761 = vmatpush.bf16.msra.mxu0 0
        %1762 = vmatpush.bf16.msra.mxu0 0
        %1763 = vmatpush.bf16.msra.mxu0 0
        %1764 = vmatpush.bf16.msra.mxu0 0
        %1765 = vmatpush.bf16.msra.mxu0 %v1756
        %1766 = vmatmul.bf16.gmra.mxu0 %v1753
        %v1767 = vpop.f32.mrf.mxu0
        %v1768 = vadd.f32 0.0, %v1767
        %v1769 = vpop.f32.mrf.mxu0
        %1770 = vdwg.mxu0
        %v1771 = vadd.f32 %v1750, %v1768
        %v1773 = vperm.slane %v1689, 0
        %v1775 = vadd.f32 %v1771, %v1773
        %v1776 = vadd.f32 %v1775, %v1313
        %v1777 = vsel %vm888, %v1776, 0.0
        %1778 = vadd.xlane.f32.xlu0 %v1777
        %v1779 = vpop.xlane.xlu0 %1778
        %v1780 = vmul.f32 %v1779, %v898
        %v1781 = vsub.f32 %v1776, %v1780
        %v1782 = vmul.f32 %v1781, %v1781
        %v1783 = vsel %vm888, %v1782, 0.0
        %1784 = vadd.xlane.f32.xlu0 %v1783
        %v1785 = vpop.xlane.xlu0 %1784
        %v1786 = vmul.f32 %v1785, %v898
        %v1787 = vadd.f32 %v1786, 1e-06
        %v1788 = vrsqrt.pop %v1787
        %v1789 = vmul.f32 %v1788, %v1787
        %v1790 = vmul.f32 %v1789, %v1788
        %v1791 = vmul.f32 0.5, %v1790
        %v1792 = vsub.f32 1.5, %v1791
        %v1793 = vmul.f32 %v1788, %v1792
        %vm1794 = vweird.f32 %v1787
        %vm1795 = vweird.f32 %v1788
        %vm1796 = vmor %vm1794, %vm1795
        %v1797 = vsel %vm1796, %v1788, %v1793
        %v1798 = vmul.f32 %v1781, %v1797
        %v1799 = vperm.slane %v872, 4
        %v1800 = vmul.f32 %v1798, %v1799
        %v1801 = vperm.slane %v872, 5
        %v1802 = vadd.f32 %v1800, %v1801
        %v1803 = vpack.c.bf16 %v1802, %v1802
        %v1804 = vld [vmem:[#allocation22] sm:$0xf]
        %v1805 = vld [vmem:[#allocation22 + $0x4] sm:$0xf]
        %v1806 = vld [vmem:[#allocation22 + $0x8] sm:$0xf]
        %v1807 = vld [vmem:[#allocation22 + $0xc] sm:$0xf]
        %v1808 = vld [vmem:[#allocation23] sm:$0x1]
        %v1810 = vperm.slane %v1808, 0
        %v1816 = vunpack.c.l.b16 %v1804
        %v1817 = vunpack.c.l.b16 %v1805
        %v1818 = vunpack.c.l.b16 %v1806
        %v1819 = vunpack.c.l.b16 %v1807
        %v1820 = vpack.c.b16 %v1817, %v1816
        %v1821 = vpack.c.b16 %v1819, %v1818
        %v1825 = vsel %vm888, %v1803, 0
        %1827 = vmatpush.bf16.msra.mxu0 0
        %1828 = vmatpush.bf16.msra.mxu0 0
        %1829 = vmatpush.bf16.msra.mxu0 0
        %1830 = vmatpush.bf16.msra.mxu0 0
        %1831 = vmatpush.bf16.msra.mxu0 0
        %1832 = vmatpush.bf16.msra.mxu0 0
        %1833 = vmatpush.bf16.msra.mxu0 %v1821
        %1834 = vmatpush.bf16.msra.mxu0 %v1820
        %1835 = vmatmul.bf16.gmra.mxu0 %v1825
        %v1836 = vpop.f32.mrf.mxu0
        %v1837 = vadd.f32 %v1810, %v1836
        %v1838 = vpop.f32.mrf.mxu0
        %1839 = vdwg.mxu0
        %v1840 = vmax.f32 %v1837, 0.0
        %v1841 = vpack.c.bf16 %v1840, %v1840
        %v1842 = vld [vmem:[%s17] sm:$0xf]
        %v1843 = vld [vmem:[%s17 + $0x4] sm:$0xf]
        %v1844 = vld [vmem:[%s17 + $0x8] sm:$0xf]
        %v1845 = vld [vmem:[%s17 + $0xc] sm:$0xf]
        %v1846 = vld [vmem:[%s17 + $0x10] sm:$0xf]
        %v1847 = vld [vmem:[%s17 + $0x14] sm:$0xf]
        %v1848 = vld [vmem:[%s17 + $0x18] sm:$0xf]
        %v1849 = vld [vmem:[%s17 + $0x1c] sm:$0xf]
        %v1850 = vld [vmem:[%s18] sm:$0x1]
        %v1852 = vperm.slane %v1850, 0
        %v1862 = vunpack.c.l.b16 %v1842
        %v1863 = vunpack.c.l.b16 %v1843
        %v1864 = vunpack.c.l.b16 %v1844
        %v1865 = vunpack.c.l.b16 %v1845
        %v1866 = vunpack.c.l.b16 %v1846
        %v1867 = vunpack.c.l.b16 %v1847
        %v1868 = vunpack.c.l.b16 %v1848
        %v1869 = vunpack.c.l.b16 %v1849
        %v1870 = vpack.c.b16 %v1863, %v1862
        %v1871 = vpack.c.b16 %v1865, %v1864
        %v1872 = vpack.c.b16 %v1867, %v1866
        %v1873 = vpack.c.b16 %v1869, %v1868
        %vm1878 = vcmask 523264
        %v1880 = vsel %vm1878, %v1841, 0
        %1882 = vmatpush.bf16.msra.mxu0 0
        %1883 = vmatpush.bf16.msra.mxu0 0
        %1884 = vmatpush.bf16.msra.mxu0 0
        %1885 = vmatpush.bf16.msra.mxu0 0
        %1886 = vmatpush.bf16.msra.mxu0 %v1873
        %1887 = vmatpush.bf16.msra.mxu0 %v1872
        %1888 = vmatpush.bf16.msra.mxu0 %v1871
        %1889 = vmatpush.bf16.msra.mxu0 %v1870
        %1890 = vmatmul.bf16.gmra.mxu0 %v1880
        %v1891 = vpop.f32.mrf.mxu0
        %v1892 = vadd.f32 %v1852, %v1891
        %v1893 = vpop.f32.mrf.mxu0
        %1894 = vdwg.mxu0
        %v1895 = vadd.f32 %v1892, %v1776
        %1897 = vrot.lane.b32.xlu0 %v1339, 32
        %v1898 = vpop.permute.xlu0 %1897
        %1901 = vrot.lane.b32.xlu0 %v1584, 64
        %v1902 = vpop.permute.xlu0 %1901
        %v1904 = vsel %vm888, %v1895, %v1898
        %v1905 = vsel %vm1878, %v1904, %v1902
        %vm1906 = vcmask 588800
        %v1907 = vsel %vm1906, %v1905, 0.0
        %1908 = vst [vmem:[%s860] sm:$0xff] %v1907
        %s1909 = sand.u32 %s472, 1
        %s1910 = scalar_lea.sflag [#allocation4], %s1909
        %s1911 = sand.u32 %s472, 1
        %s1912 = smul.addr %s1911, 8
        %s1913 = scalar_lea.vmem [#allocation25], %s1912
        // Predicated region
        $region153: #{tpu_custom_call.1} parent=95 // pred_check
          %p1914 = pneg %p482
        $region154: #{tpu_custom_call.1} parent=95 // pred_check_branch
          %1916 = sbr.rel (%p1914) target = $region156
        $region155: #{tpu_custom_call.1} parent=95 // pred_region
          %1918 = vsyncadd %s1910, 0
          %s1919 = smul.addr %s45, 8
          %s1920 = scalar_lea.hbm %s19, %s1919
          %s1922 = sshll.u32 %s1913, 4
          %s1923 = int_to_ptr.vmem [resolvable:$true] %s1922
          %s1924 = sshll.u32 %s1920, 4
          %s1925 = int_to_ptr.hbm [resolvable:$true] %s1924
          %1927 = dma.vmem_to_hbm [thread:$0]  %s1923, 128, %s1925, %s1910
        $region156: #{tpu_custom_call.1} parent=95 // pred_fallthru
          _
      $region96: #{tpu_custom_call.1} parent=5 // pred_fallthru
        _
      %p1928 = scmp.le.s32.totalorder 2, %s40
      // Predicated region
      $region157: #{tpu_custom_call.1} parent=5 // pred_check
        %p1929 = pneg %p1928
      $region158: #{tpu_custom_call.1} parent=5 // pred_check_branch
        %1931 = sbr.rel (%p1929) target = $region160
      $region159: #{tpu_custom_call.1} parent=5 // pred_region
        %s1932 = ssub.s32 %s40, 2
        // Predicated region
        $region161: #{tpu_custom_call.1} parent=159 // pred_check
          %p1933 = pneg %p488
        $region162: #{tpu_custom_call.1} parent=159 // pred_check_branch
          %1935 = sbr.rel (%p1933) target = $region164
        $region163: #{tpu_custom_call.1} parent=159 // pred_region
          %s1936 = sand.u32 %s473, 1
          %s1937 = scalar_lea.sflag [#allocation4], %s1936
          %s1938 = sand.u32 %s473, 1
          %s1939 = smul.addr %s1938, 8
          %s1940 = scalar_lea.vmem [#allocation25], %s1939
          %1942 = dma.done %s1937, 128
        $region164: #{tpu_custom_call.1} parent=159 // pred_fallthru
          _
      $region160: #{tpu_custom_call.1} parent=5 // pred_fallthru
        _
    $region6: #{tpu_custom_call.1} parent=1 // loop_footer
      %s44 = sadd.s32 1, %s40
    $region7: #{tpu_custom_call.1} parent=1 // loop_footer_branch
      %39 = sbr.rel target = $region3
    $region8: #{tpu_custom_call.1} parent=1 // loop_exit
      _
    %1943 = vsyncpa [#allocation3], 1
    %s1944 = scalar_lea.sflag [#allocation3], 1
    %1945 = vsyncpa %s1944, 1
    %1946 = vsyncpa [#allocation6], 1
    %s1947 = scalar_lea.sflag [#allocation6], 1
    %1948 = vsyncpa %s1947, 1
    %1949 = vsyncpa [#allocation9], 1
    %1950 = vsyncpa [#allocation12], 1
    %1951 = vsyncpa [#allocation15], 1
    %1952 = vsyncpa [#allocation18], 1
    %1953 = vsyncpa [#allocation21], 1
    %1954 = vsyncpa [#allocation24], 1
    %1955 = vsyncpa [#allocation4], 1
    %s1956 = scalar_lea.sflag [#allocation4], 1
    %1957 = vsyncpa %s1956, 1

</llo_original>
